<compile_context>
chip_gen: v6e
topology: v6e:2x2x1
jax: 0.10.0
libtpu: 0.0.40
codegen_flags: <defaults>
</compile_context>

<pallas_src>
import functools

import jax
import jax.numpy as jnp
import numpy as np
from jax.experimental import pallas as pl
from jax.experimental.pallas import tpu as pltpu  # noqa: F401  (TPU backend)


def _round_up(x, m):
    return (x + m - 1) // m * m


# ------------------------- Fused Pallas kernel -------------------------

def _fused_lstm_kernel(x_ref, c_in_ref, h_in_ref, wx_ref, wh_ref, b_ref,
                       w_h2o_ref, b_h2o_ref, y_ref, c_out_ref, h_out_ref,
                       *, num_layers, hp, p, out_real):
    """All layers + output head in one kernel.  Shapes are lane/sublane padded:

      x_ref      : (Bp, P)
      c_in/h_in  : (L, Bp, Hp)          (zero-padded state)
      wx_ref     : (L, P,  4*Hp)        (gate-blockwise padded, order [f,i,g,o])
      wh_ref     : (L, Hp, 4*Hp)
      b_ref      : (L, 1,  4*Hp)
      w_h2o_ref  : (Hp, Op),  b_h2o_ref : (1, Op)
      y_ref      : (Bp, Op),  c_out/h_out : (L, Bp, Hp)
    """
    x = x_ref[...]                                        # (Bp, P)
    h_new = None
    for layer in range(num_layers):                       # static unroll
        h = h_in_ref[layer]                               # (Bp, Hp)
        c = c_in_ref[layer]                               # (Bp, Hp)
        wx = wx_ref[layer]                                # (P, 4*Hp)
        if layer > 0 and p > hp:
            # Layers > 0 take the previous layer's h (Hp lanes) as input; the
            # extra zero rows of the uniformly-stacked weight are simply not
            # used -- no activation re-padding / concatenation needed.
            wx = wx[:hp, :]
        gates = (jnp.dot(x, wx, preferred_element_type=jnp.float32)
                 + jnp.dot(h, wh_ref[layer], preferred_element_type=jnp.float32)
                 + b_ref[layer])                          # (Bp, 4*Hp)
        # 128-lane-aligned gate slices -> pure VPU/EUP, no lane masking.
        f = jax.nn.sigmoid(gates[:, 0 * hp:1 * hp])
        i = jax.nn.sigmoid(gates[:, 1 * hp:2 * hp])
        g = jnp.tanh(gates[:, 2 * hp:3 * hp])
        o = jax.nn.sigmoid(gates[:, 3 * hp:4 * hp])
        c_new = c * f + i * g
        h_new = o * jnp.tanh(c_new)
        c_out_ref[layer] = c_new
        h_out_ref[layer] = h_new
        x = h_new                                          # next layer input

    # Output head + numerically-stable log_softmax on padded lanes.
    logits = (jnp.dot(h_new, w_h2o_ref[...], preferred_element_type=jnp.float32)
              + b_h2o_ref[...])                           # (Bp, Op)
    col = jax.lax.broadcasted_iota(jnp.int32, logits.shape, 1)
    logits = jnp.where(col < out_real, logits, jnp.full_like(logits, -1e30))
    m = jnp.max(logits, axis=-1, keepdims=True)
    shifted = logits - m
    lse = jnp.log(jnp.sum(jnp.exp(shifted), axis=-1, keepdims=True))
    y_ref[...] = shifted - lse


# ------------------------- Parameter packing (one-time, host side) -----------

def _pad_gate_stacked_np(w, h, hp):
    """(rows, 4*h) -> (rows, 4*hp): each gate block moved to a 128-aligned slot."""
    rows = w.shape[0]
    out = np.zeros((rows, 4 * hp), np.float32)
    for k in range(4):
        out[:, k * hp:k * hp + h] = w[:, k * h:(k + 1) * h]
    return out


def pack_params(params):
    """Pad & stack per-layer parameters into lane-aligned VMEM-friendly slabs."""
    cell_params, w_h2o, b_h2o = params
    num_layers = len(cell_params)
    H = cell_params[0]['wh'].shape[0]
    O = w_h2o.shape[1]
    in_size = cell_params[0]['wx'].shape[0]

    Hp = _round_up(H, 128)                     # lane padding (hidden)
    P = max(_round_up(in_size, 128), Hp)       # padded layer-0 input width
    Op = _round_up(O, 128)                     # lane padding (output)

    wx_all = np.zeros((num_layers, P, 4 * Hp), np.float32)
    wh_all = np.zeros((num_layers, Hp, 4 * Hp), np.float32)
    b_all = np.zeros((num_layers, 1, 4 * Hp), np.float32)
    for l, prm in enumerate(cell_params):
        rows = prm['wx'].shape[0]
        wx_all[l, :rows, :] = _pad_gate_stacked_np(np.asarray(prm['wx']), H, Hp)
        wh_all[l, :H, :] = _pad_gate_stacked_np(np.asarray(prm['wh']), H, Hp)
        b_all[l, :, :] = _pad_gate_stacked_np(np.asarray(prm['b']), H, Hp)
    w_h2o_p = np.zeros((Hp, Op), np.float32)
    w_h2o_p[:H, :O] = np.asarray(w_h2o)
    b_h2o_p = np.zeros((1, Op), np.float32)
    b_h2o_p[:, :O] = np.asarray(b_h2o)

    packed = (jnp.asarray(wx_all), jnp.asarray(wh_all), jnp.asarray(b_all),
              jnp.asarray(w_h2o_p), jnp.asarray(b_h2o_p))
    dims = dict(num_layers=num_layers, H=H, O=O, in_size=in_size,
                Hp=Hp, P=P, Op=Op)
    return packed, dims


# ------------------------- Wrapper -------------------------

def lstm_forward_packed(x, state, packed, dims):
    """Equivalent of LSTM.forward(x, state) given pre-packed parameters.

    state: (list of c, list of h) or None.
    Returns (log_probs, (new_c_list, new_h_list)).
    """
    wx_all, wh_all, b_all, w_h2o_p, b_h2o_p = packed
    num_layers, H, O = dims['num_layers'], dims['H'], dims['O']
    in_size, Hp, P, Op = dims['in_size'], dims['Hp'], dims['P'], dims['Op']
    B = x.shape[0]
    Bp = _round_up(B, 8)                       # sublane padding

    # ---- pad activations / state ----
    x_p = jnp.zeros((Bp, P), jnp.float32).at[:B, :in_size].set(x)
    c_p = jnp.zeros((num_layers, Bp, Hp), jnp.float32)
    h_p = jnp.zeros((num_layers, Bp, Hp), jnp.float32)
    if state is not None:
        c_list, h_list = state
        for l in range(num_layers):
            c_p = c_p.at[l, :B, :H].set(c_list[l])
            h_p = h_p.at[l, :B, :H].set(h_list[l])

    kernel = functools.partial(_fused_lstm_kernel, num_layers=num_layers,
                               hp=Hp, p=P, out_real=O)

    y_p, c_out_p, h_out_p = pl.pallas_call(
        kernel,
        out_shape=(jax.ShapeDtypeStruct((Bp, Op), jnp.float32),
                   jax.ShapeDtypeStruct((num_layers, Bp, Hp), jnp.float32),
                   jax.ShapeDtypeStruct((num_layers, Bp, Hp), jnp.float32)),
        in_specs=[pl.BlockSpec((Bp, P), lambda: (0, 0)),
                  pl.BlockSpec((num_layers, Bp, Hp), lambda: (0, 0, 0)),
                  pl.BlockSpec((num_layers, Bp, Hp), lambda: (0, 0, 0)),
                  pl.BlockSpec((num_layers, P, 4 * Hp), lambda: (0, 0, 0)),
                  pl.BlockSpec((num_layers, Hp, 4 * Hp), lambda: (0, 0, 0)),
                  pl.BlockSpec((num_layers, 1, 4 * Hp), lambda: (0, 0, 0)),
                  pl.BlockSpec((Hp, Op), lambda: (0, 0)),
                  pl.BlockSpec((1, Op), lambda: (0, 0))],
        out_specs=(pl.BlockSpec((Bp, Op), lambda: (0, 0)),
                   pl.BlockSpec((num_layers, Bp, Hp), lambda: (0, 0, 0)),
                   pl.BlockSpec((num_layers, Bp, Hp), lambda: (0, 0, 0))),
    )(x_p, c_p, h_p, wx_all, wh_all, b_all, w_h2o_p, b_h2o_p)

    y = y_p[:B, :O]
    c_out = [c_out_p[l, :B, :H] for l in range(num_layers)]
    h_out = [h_out_p[l, :B, :H] for l in range(num_layers)]
    return y, (c_out, h_out)


def lstm_forward(x, state, params):
    """Convenience wrapper that packs the parameters on every call."""
    packed, dims = pack_params(params)
    return lstm_forward_packed(x, state, packed, dims)


# ------------------------- Reference (pure JAX) -------------------------

def lstm_forward_ref(x, state, params):
    cell_params, w_h2o, b_h2o = params
    num_layers = len(cell_params)
    B = x.shape[0]
    H = cell_params[0]['wh'].shape[0]
    if state is None:
        c = [jnp.zeros((B, H), jnp.float32) for _ in range(num_layers)]
        h = [jnp.zeros((B, H), jnp.float32) for _ in range(num_layers)]
    else:
        c, h = list(state[0]), list(state[1])
    for idx in range(num_layers):
        p = cell_params[idx]
        gates = x @ p['wx'] + h[idx] @ p['wh'] + p['b']
        f = jax.nn.sigmoid(gates[:, 0 * H:1 * H])
        i = jax.nn.sigmoid(gates[:, 1 * H:2 * H])
        g = jnp.tanh(gates[:, 2 * H:3 * H])
        o = jax.nn.sigmoid(gates[:, 3 * H:4 * H])
        c[idx] = c[idx] * f + i * g
        h[idx] = o * jnp.tanh(c[idx])
        x = h[idx]
    logits = x @ w_h2o + b_h2o
    return jax.nn.log_softmax(logits, axis=-1), (c, h)


# ------------------------- Main -------------------------

if __name__ == "__main__":
    INPUT_SIZE = 16
    HIDDEN_SIZE = 32
    OUTPUT_SIZE = 8
    NUM_LAYERS = 2
    BATCH = 2

    key = jax.random.PRNGKey(0)
    keys = jax.random.split(key, 3 + 3 * NUM_LAYERS)

    # Deterministic parameter init (stacked gate order [f, i, g, o]).
    cell_params = []
    for layer in range(NUM_LAYERS):
        in_size = INPUT_SIZE if layer == 0 else HIDDEN_SIZE
        k_wx, k_wh, k_b = jax.random.split(keys[layer], 3)
        scale = 1.0 / np.sqrt(in_size + HIDDEN_SIZE)
        cell_params.append({
            'wx': jax.random.normal(k_wx, (in_size, 4 * HIDDEN_SIZE), jnp.float32) * scale,
            'wh': jax.random.normal(k_wh, (HIDDEN_SIZE, 4 * HIDDEN_SIZE), jnp.float32) * scale,
            'b': jax.random.normal(k_b, (1, 4 * HIDDEN_SIZE), jnp.float32) * scale,
        })
    w_h2o = jax.random.normal(keys[NUM_LAYERS], (HIDDEN_SIZE, OUTPUT_SIZE),
                              jnp.float32) / np.sqrt(HIDDEN_SIZE)
    b_h2o = jax.random.normal(keys[NUM_LAYERS + 1], (1, OUTPUT_SIZE),
                              jnp.float32) * 0.1
    params = (cell_params, w_h2o, b_h2o)

    x = jax.random.normal(keys[NUM_LAYERS + 2], (BATCH, INPUT_SIZE), jnp.float32)

    # Pack (pad + stack) parameters ONCE; reused across calls.
    packed, dims = pack_params(params)

    # Step 1: state=None (zero-initialized c/h).
    y, (c_out, h_out) = lstm_forward_packed(x, None, packed, dims)
    y = jax.block_until_ready(y)
    jax.block_until_ready(c_out)
    jax.block_until_ready(h_out)

    y_ref, (c_ref, h_ref) = lstm_forward_ref(x, None, params)
    assert np.allclose(np.asarray(y), np.asarray(y_ref), atol=1e-5, rtol=1e-5)
    for a, b in zip(c_out, c_ref):
        assert np.allclose(np.asarray(a), np.asarray(b), atol=1e-5, rtol=1e-5)
    for a, b in zip(h_out, h_ref):
        assert np.allclose(np.asarray(a), np.asarray(b), atol=1e-5, rtol=1e-5)

    # Step 2: feed the returned state back (exercises the non-None state path).
    y2, (c_out2, h_out2) = lstm_forward_packed(x, (c_out, h_out), packed, dims)
    jax.block_until_ready(y2)
    y2_ref, (c2_ref, h2_ref) = lstm_forward_ref(x, (c_ref, h_ref), params)
    assert np.allclose(np.asarray(y2), np.asarray(y2_ref), atol=1e-5, rtol=1e-5)
    for a, b in zip(c_out2, c2_ref):
        assert np.allclose(np.asarray(a), np.asarray(b), atol=1e-5, rtol=1e-5)
    for a, b in zip(h_out2, h2_ref):
        assert np.allclose(np.asarray(a), np.asarray(b), atol=1e-5, rtol=1e-5)

    print("KERNEL_OK")
</pallas_src>

<mosaic_0001>
module attributes {stable_mosaic.version = 11 : i64} {
  func.func @_fused_lstm_kernel(%arg0: memref<8x128xf32, #tpu.memory_space<vmem>>, %arg1: memref<2x8x128xf32, #tpu.memory_space<vmem>>, %arg2: memref<2x8x128xf32, #tpu.memory_space<vmem>>, %arg3: memref<2x128x512xf32, #tpu.memory_space<vmem>>, %arg4: memref<2x128x512xf32, #tpu.memory_space<vmem>>, %arg5: memref<2x1x512xf32, #tpu.memory_space<vmem>>, %arg6: memref<128x128xf32, #tpu.memory_space<vmem>>, %arg7: memref<1x128xf32, #tpu.memory_space<vmem>>, %arg8: memref<8x128xf32, #tpu.memory_space<vmem>>, %arg9: memref<2x8x128xf32, #tpu.memory_space<vmem>>, %arg10: memref<2x8x128xf32, #tpu.memory_space<vmem>>) attributes {dimension_semantics = [], scalar_prefetch = 0 : i64, scratch_operands = 0 : i64, tpu.core_type = #tpu.core_type<tc>} {
    %c0 = arith.constant 0 : index
    %c0_0 = arith.constant 0 : index
    %0 = vector.load %arg0[%c0, %c0_0] : memref<8x128xf32, #tpu.memory_space<vmem>>, vector<8x128xf32>
    %c0_1 = arith.constant 0 : index
    %c0_2 = arith.constant 0 : index
    %c0_3 = arith.constant 0 : index
    %1 = vector.load %arg2[%c0_1, %c0_2, %c0_3] : memref<2x8x128xf32, #tpu.memory_space<vmem>>, vector<1x8x128xf32>
    %2 = vector.shape_cast %1 : vector<1x8x128xf32> to vector<8x128xf32>
    %c0_4 = arith.constant 0 : index
    %c0_5 = arith.constant 0 : index
    %c0_6 = arith.constant 0 : index
    %3 = vector.load %arg1[%c0_4, %c0_5, %c0_6] : memref<2x8x128xf32, #tpu.memory_space<vmem>>, vector<1x8x128xf32>
    %4 = vector.shape_cast %3 : vector<1x8x128xf32> to vector<8x128xf32>
    %c0_7 = arith.constant 0 : index
    %c0_8 = arith.constant 0 : index
    %c0_9 = arith.constant 0 : index
    %5 = vector.load %arg3[%c0_7, %c0_8, %c0_9] : memref<2x128x512xf32, #tpu.memory_space<vmem>>, vector<1x128x512xf32>
    %6 = vector.shape_cast %5 : vector<1x128x512xf32> to vector<128x512xf32>
    %cst = arith.constant dense<0.000000e+00> : vector<8x512xf32>
    %7 = tpu.matmul %0, %6, %cst {dimension_numbers = #tpu.dot_dimension_numbers<[1], [0], [0], [1], [0, 0, 1, 1], [], []>} : vector<8x128xf32>, vector<128x512xf32>, vector<8x512xf32> -> vector<8x512xf32>
    %c0_10 = arith.constant 0 : index
    %c0_11 = arith.constant 0 : index
    %c0_12 = arith.constant 0 : index
    %8 = vector.load %arg4[%c0_10, %c0_11, %c0_12] : memref<2x128x512xf32, #tpu.memory_space<vmem>>, vector<1x128x512xf32>
    %9 = vector.shape_cast %8 : vector<1x128x512xf32> to vector<128x512xf32>
    %cst_13 = arith.constant dense<0.000000e+00> : vector<8x512xf32>
    %10 = tpu.matmul %2, %9, %cst_13 {dimension_numbers = #tpu.dot_dimension_numbers<[1], [0], [0], [1], [0, 0, 1, 1], [], []>} : vector<8x128xf32>, vector<128x512xf32>, vector<8x512xf32> -> vector<8x512xf32>
    %11 = arith.addf %7, %10 : vector<8x512xf32>
    %c0_14 = arith.constant 0 : index
    %c0_15 = arith.constant 0 : index
    %c0_16 = arith.constant 0 : index
    %12 = vector.load %arg5[%c0_14, %c0_15, %c0_16] : memref<2x1x512xf32, #tpu.memory_space<vmem>>, vector<1x1x512xf32>
    %13 = vector.shape_cast %12 : vector<1x1x512xf32> to vector<1x512xf32>
    %14 = vector.broadcast %13 : vector<1x512xf32> to vector<8x512xf32>
    %15 = arith.addf %11, %14 : vector<8x512xf32>
    %16 = vector.extract_strided_slice %15 {offsets = [0, 0], sizes = [8, 128], strides = [1, 1]} : vector<8x512xf32> to vector<8x128xf32>
    %17 = arith.negf %16 : vector<8x128xf32>
    %18 = math.exp %17 : vector<8x128xf32>
    %cst_17 = arith.constant 1.000000e+00 : f32
    %19 = vector.broadcast %cst_17 : f32 to vector<8x128xf32>
    %20 = arith.addf %19, %18 : vector<8x128xf32>
    %21 = arith.divf %19, %20 : vector<8x128xf32>
    %22 = vector.extract_strided_slice %15 {offsets = [0, 128], sizes = [8, 128], strides = [1, 1]} : vector<8x512xf32> to vector<8x128xf32>
    %23 = arith.negf %22 : vector<8x128xf32>
    %24 = math.exp %23 : vector<8x128xf32>
    %cst_18 = arith.constant 1.000000e+00 : f32
    %25 = vector.broadcast %cst_18 : f32 to vector<8x128xf32>
    %26 = arith.addf %25, %24 : vector<8x128xf32>
    %27 = arith.divf %25, %26 : vector<8x128xf32>
    %28 = vector.extract_strided_slice %15 {offsets = [0, 256], sizes = [8, 128], strides = [1, 1]} : vector<8x512xf32> to vector<8x128xf32>
    %29 = math.tanh %28 : vector<8x128xf32>
    %30 = vector.extract_strided_slice %15 {offsets = [0, 384], sizes = [8, 128], strides = [1, 1]} : vector<8x512xf32> to vector<8x128xf32>
    %31 = arith.negf %30 : vector<8x128xf32>
    %32 = math.exp %31 : vector<8x128xf32>
    %cst_19 = arith.constant 1.000000e+00 : f32
    %33 = vector.broadcast %cst_19 : f32 to vector<8x128xf32>
    %34 = arith.addf %33, %32 : vector<8x128xf32>
    %35 = arith.divf %33, %34 : vector<8x128xf32>
    %36 = arith.mulf %4, %21 : vector<8x128xf32>
    %37 = arith.mulf %27, %29 : vector<8x128xf32>
    %38 = arith.addf %36, %37 : vector<8x128xf32>
    %39 = math.tanh %38 : vector<8x128xf32>
    %40 = arith.mulf %35, %39 : vector<8x128xf32>
    %c0_20 = arith.constant 0 : index
    %c0_21 = arith.constant 0 : index
    %c0_22 = arith.constant 0 : index
    %41 = vector.load %arg9[%c0_20, %c0_21, %c0_22] : memref<2x8x128xf32, #tpu.memory_space<vmem>>, vector<1x8x128xf32>
    %42 = vector.shape_cast %41 : vector<1x8x128xf32> to vector<8x128xf32>
    %43 = vector.shape_cast %38 : vector<8x128xf32> to vector<1x8x128xf32>
    tpu.vector_store %arg9[%c0_20, %c0_21, %c0_22], %43 {strides = array<i32>} : memref<2x8x128xf32, #tpu.memory_space<vmem>>, vector<1x8x128xf32>,
    %c0_23 = arith.constant 0 : index
    %c0_24 = arith.constant 0 : index
    %c0_25 = arith.constant 0 : index
    %44 = vector.load %arg10[%c0_23, %c0_24, %c0_25] : memref<2x8x128xf32, #tpu.memory_space<vmem>>, vector<1x8x128xf32>
    %45 = vector.shape_cast %44 : vector<1x8x128xf32> to vector<8x128xf32>
    %46 = vector.shape_cast %40 : vector<8x128xf32> to vector<1x8x128xf32>
    tpu.vector_store %arg10[%c0_23, %c0_24, %c0_25], %46 {strides = array<i32>} : memref<2x8x128xf32, #tpu.memory_space<vmem>>, vector<1x8x128xf32>,
    %c1 = arith.constant 1 : index
    %c0_26 = arith.constant 0 : index
    %c0_27 = arith.constant 0 : index
    %47 = vector.load %arg2[%c1, %c0_26, %c0_27] : memref<2x8x128xf32, #tpu.memory_space<vmem>>, vector<1x8x128xf32>
    %48 = vector.shape_cast %47 : vector<1x8x128xf32> to vector<8x128xf32>
    %c1_28 = arith.constant 1 : index
    %c0_29 = arith.constant 0 : index
    %c0_30 = arith.constant 0 : index
    %49 = vector.load %arg1[%c1_28, %c0_29, %c0_30] : memref<2x8x128xf32, #tpu.memory_space<vmem>>, vector<1x8x128xf32>
    %50 = vector.shape_cast %49 : vector<1x8x128xf32> to vector<8x128xf32>
    %c1_31 = arith.constant 1 : index
    %c0_32 = arith.constant 0 : index
    %c0_33 = arith.constant 0 : index
    %51 = vector.load %arg3[%c1_31, %c0_32, %c0_33] : memref<2x128x512xf32, #tpu.memory_space<vmem>>, vector<1x128x512xf32>
    %52 = vector.shape_cast %51 : vector<1x128x512xf32> to vector<128x512xf32>
    %cst_34 = arith.constant dense<0.000000e+00> : vector<8x512xf32>
    %53 = tpu.matmul %40, %52, %cst_34 {dimension_numbers = #tpu.dot_dimension_numbers<[1], [0], [0], [1], [0, 0, 1, 1], [], []>} : vector<8x128xf32>, vector<128x512xf32>, vector<8x512xf32> -> vector<8x512xf32>
    %c1_35 = arith.constant 1 : index
    %c0_36 = arith.constant 0 : index
    %c0_37 = arith.constant 0 : index
    %54 = vector.load %arg4[%c1_35, %c0_36, %c0_37] : memref<2x128x512xf32, #tpu.memory_space<vmem>>, vector<1x128x512xf32>
    %55 = vector.shape_cast %54 : vector<1x128x512xf32> to vector<128x512xf32>
    %cst_38 = arith.constant dense<0.000000e+00> : vector<8x512xf32>
    %56 = tpu.matmul %48, %55, %cst_38 {dimension_numbers = #tpu.dot_dimension_numbers<[1], [0], [0], [1], [0, 0, 1, 1], [], []>} : vector<8x128xf32>, vector<128x512xf32>, vector<8x512xf32> -> vector<8x512xf32>
    %57 = arith.addf %53, %56 : vector<8x512xf32>
    %c1_39 = arith.constant 1 : index
    %c0_40 = arith.constant 0 : index
    %c0_41 = arith.constant 0 : index
    %58 = vector.load %arg5[%c1_39, %c0_40, %c0_41] : memref<2x1x512xf32, #tpu.memory_space<vmem>>, vector<1x1x512xf32>
    %59 = vector.shape_cast %58 : vector<1x1x512xf32> to vector<1x512xf32>
    %60 = vector.broadcast %59 : vector<1x512xf32> to vector<8x512xf32>
    %61 = arith.addf %57, %60 : vector<8x512xf32>
    %62 = vector.extract_strided_slice %61 {offsets = [0, 0], sizes = [8, 128], strides = [1, 1]} : vector<8x512xf32> to vector<8x128xf32>
    %63 = arith.negf %62 : vector<8x128xf32>
    %64 = math.exp %63 : vector<8x128xf32>
    %cst_42 = arith.constant 1.000000e+00 : f32
    %65 = vector.broadcast %cst_42 : f32 to vector<8x128xf32>
    %66 = arith.addf %65, %64 : vector<8x128xf32>
    %67 = arith.divf %65, %66 : vector<8x128xf32>
    %68 = vector.extract_strided_slice %61 {offsets = [0, 128], sizes = [8, 128], strides = [1, 1]} : vector<8x512xf32> to vector<8x128xf32>
    %69 = arith.negf %68 : vector<8x128xf32>
    %70 = math.exp %69 : vector<8x128xf32>
    %cst_43 = arith.constant 1.000000e+00 : f32
    %71 = vector.broadcast %cst_43 : f32 to vector<8x128xf32>
    %72 = arith.addf %71, %70 : vector<8x128xf32>
    %73 = arith.divf %71, %72 : vector<8x128xf32>
    %74 = vector.extract_strided_slice %61 {offsets = [0, 256], sizes = [8, 128], strides = [1, 1]} : vector<8x512xf32> to vector<8x128xf32>
    %75 = math.tanh %74 : vector<8x128xf32>
    %76 = vector.extract_strided_slice %61 {offsets = [0, 384], sizes = [8, 128], strides = [1, 1]} : vector<8x512xf32> to vector<8x128xf32>
    %77 = arith.negf %76 : vector<8x128xf32>
    %78 = math.exp %77 : vector<8x128xf32>
    %cst_44 = arith.constant 1.000000e+00 : f32
    %79 = vector.broadcast %cst_44 : f32 to vector<8x128xf32>
    %80 = arith.addf %79, %78 : vector<8x128xf32>
    %81 = arith.divf %79, %80 : vector<8x128xf32>
    %82 = arith.mulf %50, %67 : vector<8x128xf32>
    %83 = arith.mulf %73, %75 : vector<8x128xf32>
    %84 = arith.addf %82, %83 : vector<8x128xf32>
    %85 = math.tanh %84 : vector<8x128xf32>
    %86 = arith.mulf %81, %85 : vector<8x128xf32>
    %c1_45 = arith.constant 1 : index
    %c0_46 = arith.constant 0 : index
    %c0_47 = arith.constant 0 : index
    %87 = vector.load %arg9[%c1_45, %c0_46, %c0_47] : memref<2x8x128xf32, #tpu.memory_space<vmem>>, vector<1x8x128xf32>
    %88 = vector.shape_cast %87 : vector<1x8x128xf32> to vector<8x128xf32>
    %89 = vector.shape_cast %84 : vector<8x128xf32> to vector<1x8x128xf32>
    tpu.vector_store %arg9[%c1_45, %c0_46, %c0_47], %89 {strides = array<i32>} : memref<2x8x128xf32, #tpu.memory_space<vmem>>, vector<1x8x128xf32>,
    %c1_48 = arith.constant 1 : index
    %c0_49 = arith.constant 0 : index
    %c0_50 = arith.constant 0 : index
    %90 = vector.load %arg10[%c1_48, %c0_49, %c0_50] : memref<2x8x128xf32, #tpu.memory_space<vmem>>, vector<1x8x128xf32>
    %91 = vector.shape_cast %90 : vector<1x8x128xf32> to vector<8x128xf32>
    %92 = vector.shape_cast %86 : vector<8x128xf32> to vector<1x8x128xf32>
    tpu.vector_store %arg10[%c1_48, %c0_49, %c0_50], %92 {strides = array<i32>} : memref<2x8x128xf32, #tpu.memory_space<vmem>>, vector<1x8x128xf32>,
    %c0_51 = arith.constant 0 : index
    %c0_52 = arith.constant 0 : index
    %93 = vector.load %arg6[%c0_51, %c0_52] : memref<128x128xf32, #tpu.memory_space<vmem>>, vector<128x128xf32>
    %cst_53 = arith.constant dense<0.000000e+00> : vector<8x128xf32>
    %94 = tpu.matmul %86, %93, %cst_53 {dimension_numbers = #tpu.dot_dimension_numbers<[1], [0], [0], [1], [0, 0, 1, 1], [], []>} : vector<8x128xf32>, vector<128x128xf32>, vector<8x128xf32> -> vector<8x128xf32>
    %c0_54 = arith.constant 0 : index
    %c0_55 = arith.constant 0 : index
    %95 = vector.load %arg7[%c0_54, %c0_55] : memref<1x128xf32, #tpu.memory_space<vmem>>, vector<1x128xf32>
    %96 = vector.broadcast %95 : vector<1x128xf32> to vector<8x128xf32>
    %97 = arith.addf %94, %96 : vector<8x128xf32>
    %98 = tpu.iota {dimensions = array<i32: 1>} : vector<8x128xi32>
    %c8_i32 = arith.constant 8 : i32
    %99 = vector.broadcast %c8_i32 : i32 to vector<8x128xi32>
    %100 = arith.cmpi slt, %98, %99 : vector<8x128xi32>
    %cst_56 = arith.constant -1.000000e+30 : f32
    %101 = vector.broadcast %cst_56 : f32 to vector<8x128xf32>
    %102 = arith.select %100, %97, %101 : vector<8x128xi1>, vector<8x128xf32>
    %cst_57 = arith.constant dense<0xFF800000> : vector<8xf32>
    %103 = vector.multi_reduction <maximumf>, %102, %cst_57 [1] : vector<8x128xf32> to vector<8xf32>
    %104 = vector.shape_cast %103 : vector<8xf32> to vector<8x1xf32>
    %105 = vector.broadcast %104 : vector<8x1xf32> to vector<8x128xf32>
    %106 = arith.subf %102, %105 : vector<8x128xf32>
    %107 = math.exp %106 : vector<8x128xf32>
    %cst_58 = arith.constant dense<0.000000e+00> : vector<8xf32>
    %108 = vector.multi_reduction <add>, %107, %cst_58 [1] : vector<8x128xf32> to vector<8xf32>
    %109 = vector.shape_cast %108 : vector<8xf32> to vector<8x1xf32>
    %110 = math.log %109 : vector<8x1xf32>
    %111 = vector.broadcast %110 : vector<8x1xf32> to vector<8x128xf32>
    %112 = arith.subf %106, %111 : vector<8x128xf32>
    %c0_59 = arith.constant 0 : index
    %c0_60 = arith.constant 0 : index
    %113 = vector.load %arg8[%c0_59, %c0_60] : memref<8x128xf32, #tpu.memory_space<vmem>>, vector<8x128xf32>
    tpu.vector_store %arg8[%c0_59, %c0_60], %112 {strides = array<i32>} : memref<8x128xf32, #tpu.memory_space<vmem>>, vector<8x128xf32>,
    return
  }
}

</mosaic_0001>

<llo_original>
// kernel: tpu_custom_call.1
$region0: #{tpu_custom_call.1}
  #allocation0 [shape = 'u32[]', space=smem, size = 0x4, offset = 0x4, fixed_abs, tag = 'smem constant byte address 0x4 - core index']
  #allocation1 [shape = 'u32[144,128]{1,0:T(1,128)}', space=vmem, size = 0x12000, scoped, tag = 'internal scratch']
  %s0 = inlined_call_operand.hbm [shape: f32[8,128], index: 0, kind: input, shape index: {}]
  %s1 = inlined_call_operand.hbm [shape: f32[2,8,128], index: 1, kind: input, shape index: {}]
  %s2 = inlined_call_operand.hbm [shape: f32[2,8,128], index: 2, kind: input, shape index: {}]
  %s3 = inlined_call_operand.hbm [shape: f32[2,128,512], index: 3, kind: input, shape index: {}]
  %s4 = inlined_call_operand.hbm [shape: f32[2,128,512], index: 4, kind: input, shape index: {}]
  %s5 = inlined_call_operand.vmem [shape: f32[2,1,512], index: 5, kind: input, shape index: {}]
  %s6 = inlined_call_operand.hbm [shape: f32[128,128], index: 6, kind: input, shape index: {}]
  %s7 = inlined_call_operand.vmem [shape: f32[1,128], index: 7, kind: input, shape index: {}]
  %s8 = inlined_call_operand.hbm [shape: f32[8,128], index: 8, kind: output, shape index: {0}]
  %s9 = inlined_call_operand.hbm [shape: f32[2,8,128], index: 9, kind: output, shape index: {1}]
  %s10 = inlined_call_operand.hbm [shape: f32[2,8,128], index: 10, kind: output, shape index: {2}]
  %11 = xla_tuple %s8, %s9, %s10
  %s12 = sld [smem:[#allocation0]]
  $region82: #{tpu_custom_call.1} parent=0
    _
  %s14 = ssub.s32 1, %s12
  %s15 = scalar_select 0, %s14, %s12
  $region1: #{tpu_custom_call.1} parent=0
    #allocation2 [shape = 'u8[4096]{0}', space=vmem, size = 0x1000, scoped, tag = 'input window, operand 0, single buffered']
    #allocation3 [shape = 's32[1]{0}', space=sflag, size = 0x4, scoped, tag = 'scoped memory for tpu_custom_call.1']
    #allocation4 [shape = 's32[1]{0}', space=sflag, size = 0x4, scoped, tag = 'scoped memory for tpu_custom_call.1']
    #allocation5 [shape = 'u8[8192]{0}', space=vmem, size = 0x2000, scoped, tag = 'input window, operand 1, single buffered']
    #allocation6 [shape = 's32[1]{0}', space=sflag, size = 0x4, scoped, tag = 'scoped memory for tpu_custom_call.1']
    #allocation7 [shape = 'u8[8192]{0}', space=vmem, size = 0x2000, scoped, tag = 'input window, operand 2, single buffered']
    #allocation8 [shape = 'u8[524288]{0}', space=vmem, size = 0x80000, scoped, tag = 'input window, operand 3, single buffered']
    #allocation9 [shape = 's32[1]{0}', space=sflag, size = 0x4, scoped, tag = 'scoped memory for tpu_custom_call.1']
    #allocation10 [shape = 'u8[524288]{0}', space=vmem, size = 0x80000, scoped, tag = 'input window, operand 4, single buffered']
    #allocation11 [shape = 'u8[65536]{0}', space=vmem, size = 0x10000, scoped, tag = 'input window, operand 6, single buffered']
    #allocation12 [shape = 's32[1]{0}', space=sflag, size = 0x4, scoped, tag = 'scoped memory for tpu_custom_call.1']
    #allocation13 [shape = 'u8[4096]{0}', space=vmem, size = 0x1000, scoped, tag = 'output window, operand 0, single buffered']
    #allocation14 [shape = 'u8[8192]{0}', space=vmem, size = 0x2000, scoped, tag = 'output window, operand 1, single buffered']
    #allocation15 [shape = 's32[1]{0}', space=sflag, size = 0x4, scoped, tag = 'scoped memory for tpu_custom_call.1']
    #allocation16 [shape = 'u8[8192]{0}', space=vmem, size = 0x2000, scoped, tag = 'output window, operand 2, single buffered']
    %16 = vsyncpa [#allocation3], 0
    %17 = vsyncpa [#allocation6], 0
    %18 = vsyncpa [#allocation9], 0
    %19 = vsyncpa [#allocation12], 0
    %20 = vsyncpa [#allocation4], 0
    %21 = vsyncpa [#allocation15], 0
    // Predicated region
    $region2: #{tpu_custom_call.1} parent=1 // pred_check
      _
    $region3: #{tpu_custom_call.1} parent=1 // pred_check_branch
      %23 = sbr.rel (0) target = $region5
    $region4: #{tpu_custom_call.1} parent=1 // pred_region
      %s25 = ssub.s32 128, 128
      %26 = vsyncadd [#allocation3], %s25
      %s28 = sshll.u32 [#allocation2], 4
      %s29 = int_to_ptr.vmem [resolvable:$true] %s28
      %31 = dma.hbm_to_vmem [thread:$0]  %s0, 128, %s29, [#allocation3]
    $region5: #{tpu_custom_call.1} parent=1 // pred_fallthru
      _
    // Predicated region
    $region6: #{tpu_custom_call.1} parent=1 // pred_check
      _
    $region7: #{tpu_custom_call.1} parent=1 // pred_check_branch
      %33 = sbr.rel (0) target = $region9
    $region8: #{tpu_custom_call.1} parent=1 // pred_region
      %s35 = ssub.s32 256, 256
      %36 = vsyncadd [#allocation6], %s35
      %s37 = sshll.u32 [#allocation5], 4
      %s38 = int_to_ptr.vmem [resolvable:$true] %s37
      %43 = dma.hbm_to_vmem [thread:$0]  %s1, 256, %s38, [#allocation6], 128, 128, 8
    $region9: #{tpu_custom_call.1} parent=1 // pred_fallthru
      _
    // Predicated region
    $region10: #{tpu_custom_call.1} parent=1 // pred_check
      _
    $region11: #{tpu_custom_call.1} parent=1 // pred_check_branch
      %45 = sbr.rel (0) target = $region13
    $region12: #{tpu_custom_call.1} parent=1 // pred_region
      %s47 = ssub.s32 256, 256
      %48 = vsyncadd [#allocation6], %s47
      %s49 = sshll.u32 [#allocation7], 4
      %s50 = int_to_ptr.vmem [resolvable:$true] %s49
      %55 = dma.hbm_to_vmem [thread:$0]  %s2, 256, %s50, [#allocation6], 128, 128, 8
    $region13: #{tpu_custom_call.1} parent=1 // pred_fallthru
      _
    // Predicated region
    $region14: #{tpu_custom_call.1} parent=1 // pred_check
      _
    $region15: #{tpu_custom_call.1} parent=1 // pred_check_branch
      %57 = sbr.rel (0) target = $region17
    $region16: #{tpu_custom_call.1} parent=1 // pred_region
      %s59 = ssub.s32 16384, 16384
      %60 = vsyncadd [#allocation9], %s59
      %s61 = sshll.u32 [#allocation8], 4
      %s62 = int_to_ptr.vmem [resolvable:$true] %s61
      %67 = dma.hbm_to_vmem [thread:$0]  %s3, 16384, %s62, [#allocation9], 512, 512, 32
    $region17: #{tpu_custom_call.1} parent=1 // pred_fallthru
      _
    // Predicated region
    $region18: #{tpu_custom_call.1} parent=1 // pred_check
      _
    $region19: #{tpu_custom_call.1} parent=1 // pred_check_branch
      %69 = sbr.rel (0) target = $region21
    $region20: #{tpu_custom_call.1} parent=1 // pred_region
      %s71 = ssub.s32 16384, 16384
      %72 = vsyncadd [#allocation9], %s71
      %s73 = sshll.u32 [#allocation10], 4
      %s74 = int_to_ptr.vmem [resolvable:$true] %s73
      %79 = dma.hbm_to_vmem [thread:$0]  %s4, 16384, %s74, [#allocation9], 512, 512, 32
    $region21: #{tpu_custom_call.1} parent=1 // pred_fallthru
      _
    // Predicated region
    $region22: #{tpu_custom_call.1} parent=1 // pred_check
      _
    $region23: #{tpu_custom_call.1} parent=1 // pred_check_branch
      %81 = sbr.rel (0) target = $region25
    $region24: #{tpu_custom_call.1} parent=1 // pred_region
      _
    $region25: #{tpu_custom_call.1} parent=1 // pred_fallthru
      _
    // Predicated region
    $region26: #{tpu_custom_call.1} parent=1 // pred_check
      _
    $region27: #{tpu_custom_call.1} parent=1 // pred_check_branch
      %83 = sbr.rel (0) target = $region29
    $region28: #{tpu_custom_call.1} parent=1 // pred_region
      %s85 = ssub.s32 2048, 2048
      %86 = vsyncadd [#allocation12], %s85
      %s87 = sshll.u32 [#allocation11], 4
      %s88 = int_to_ptr.vmem [resolvable:$true] %s87
      %93 = dma.hbm_to_vmem [thread:$0]  %s6, 2048, %s88, [#allocation12], 128, 128, 8
    $region29: #{tpu_custom_call.1} parent=1 // pred_fallthru
      _
    // Predicated region
    $region30: #{tpu_custom_call.1} parent=1 // pred_check
      _
    $region31: #{tpu_custom_call.1} parent=1 // pred_check_branch
      %95 = sbr.rel (0) target = $region33
    $region32: #{tpu_custom_call.1} parent=1 // pred_region
      _
    $region33: #{tpu_custom_call.1} parent=1 // pred_fallthru
      _
    // Predicated region
    $region34: #{tpu_custom_call.1} parent=1 // pred_check
      _
    $region35: #{tpu_custom_call.1} parent=1 // pred_check_branch
      %97 = sbr.rel (0) target = $region37
    $region36: #{tpu_custom_call.1} parent=1 // pred_region
      %98 = dma.done [#allocation3], 128
    $region37: #{tpu_custom_call.1} parent=1 // pred_fallthru
      _
    // Predicated region
    $region38: #{tpu_custom_call.1} parent=1 // pred_check
      _
    $region39: #{tpu_custom_call.1} parent=1 // pred_check_branch
      %100 = sbr.rel (0) target = $region41
    $region40: #{tpu_custom_call.1} parent=1 // pred_region
      %101 = dma.done [#allocation6], 256
    $region41: #{tpu_custom_call.1} parent=1 // pred_fallthru
      _
    // Predicated region
    $region42: #{tpu_custom_call.1} parent=1 // pred_check
      _
    $region43: #{tpu_custom_call.1} parent=1 // pred_check_branch
      %103 = sbr.rel (0) target = $region45
    $region44: #{tpu_custom_call.1} parent=1 // pred_region
      %104 = dma.done [#allocation6], 256
    $region45: #{tpu_custom_call.1} parent=1 // pred_fallthru
      _
    // Predicated region
    $region46: #{tpu_custom_call.1} parent=1 // pred_check
      _
    $region47: #{tpu_custom_call.1} parent=1 // pred_check_branch
      %106 = sbr.rel (0) target = $region49
    $region48: #{tpu_custom_call.1} parent=1 // pred_region
      %107 = dma.done [#allocation9], 16384
    $region49: #{tpu_custom_call.1} parent=1 // pred_fallthru
      _
    // Predicated region
    $region50: #{tpu_custom_call.1} parent=1 // pred_check
      _
    $region51: #{tpu_custom_call.1} parent=1 // pred_check_branch
      %109 = sbr.rel (0) target = $region53
    $region52: #{tpu_custom_call.1} parent=1 // pred_region
      %110 = dma.done [#allocation9], 16384
    $region53: #{tpu_custom_call.1} parent=1 // pred_fallthru
      _
    // Predicated region
    $region54: #{tpu_custom_call.1} parent=1 // pred_check
      _
    $region55: #{tpu_custom_call.1} parent=1 // pred_check_branch
      %112 = sbr.rel (0) target = $region57
    $region56: #{tpu_custom_call.1} parent=1 // pred_region
      %113 = dma.done [#allocation12], 2048
    $region57: #{tpu_custom_call.1} parent=1 // pred_fallthru
      _
    %v114 = vld [vmem:[#allocation2] sm:$0xff]
    %v115 = vld [vmem:[#allocation7] sm:$0xff]
    %v116 = vld [vmem:[#allocation5] sm:$0xff]
    %v117 = vld [vmem:[#allocation8] sm:$0xff]
    %v118 = vld [vmem:[#allocation8 + $0x8] sm:$0xff]
    %v119 = vld [vmem:[#allocation8 + $0x10] sm:$0xff]
    %v120 = vld [vmem:[#allocation8 + $0x18] sm:$0xff]
    %v121 = vld [vmem:[#allocation8 + $0x20] sm:$0xff]
    %v122 = vld [vmem:[#allocation8 + $0x28] sm:$0xff]
    %v123 = vld [vmem:[#allocation8 + $0x30] sm:$0xff]
    %v124 = vld [vmem:[#allocation8 + $0x38] sm:$0xff]
    %v125 = vld [vmem:[#allocation8 + $0x40] sm:$0xff]
    %v126 = vld [vmem:[#allocation8 + $0x48] sm:$0xff]
    %v127 = vld [vmem:[#allocation8 + $0x50] sm:$0xff]
    %v128 = vld [vmem:[#allocation8 + $0x58] sm:$0xff]
    %v129 = vld [vmem:[#allocation8 + $0x60] sm:$0xff]
    %v130 = vld [vmem:[#allocation8 + $0x68] sm:$0xff]
    %v131 = vld [vmem:[#allocation8 + $0x70] sm:$0xff]
    %v132 = vld [vmem:[#allocation8 + $0x78] sm:$0xff]
    %v133 = vld [vmem:[#allocation8 + $0x80] sm:$0xff]
    %v134 = vld [vmem:[#allocation8 + $0x88] sm:$0xff]
    %v135 = vld [vmem:[#allocation8 + $0x90] sm:$0xff]
    %v136 = vld [vmem:[#allocation8 + $0x98] sm:$0xff]
    %v137 = vld [vmem:[#allocation8 + $0xa0] sm:$0xff]
    %v138 = vld [vmem:[#allocation8 + $0xa8] sm:$0xff]
    %v139 = vld [vmem:[#allocation8 + $0xb0] sm:$0xff]
    %v140 = vld [vmem:[#allocation8 + $0xb8] sm:$0xff]
    %v141 = vld [vmem:[#allocation8 + $0xc0] sm:$0xff]
    %v142 = vld [vmem:[#allocation8 + $0xc8] sm:$0xff]
    %v143 = vld [vmem:[#allocation8 + $0xd0] sm:$0xff]
    %v144 = vld [vmem:[#allocation8 + $0xd8] sm:$0xff]
    %v145 = vld [vmem:[#allocation8 + $0xe0] sm:$0xff]
    %v146 = vld [vmem:[#allocation8 + $0xe8] sm:$0xff]
    %v147 = vld [vmem:[#allocation8 + $0xf0] sm:$0xff]
    %v148 = vld [vmem:[#allocation8 + $0xf8] sm:$0xff]
    %v149 = vld [vmem:[#allocation8 + $0x100] sm:$0xff]
    %v150 = vld [vmem:[#allocation8 + $0x108] sm:$0xff]
    %v151 = vld [vmem:[#allocation8 + $0x110] sm:$0xff]
    %v152 = vld [vmem:[#allocation8 + $0x118] sm:$0xff]
    %v153 = vld [vmem:[#allocation8 + $0x120] sm:$0xff]
    %v154 = vld [vmem:[#allocation8 + $0x128] sm:$0xff]
    %v155 = vld [vmem:[#allocation8 + $0x130] sm:$0xff]
    %v156 = vld [vmem:[#allocation8 + $0x138] sm:$0xff]
    %v157 = vld [vmem:[#allocation8 + $0x140] sm:$0xff]
    %v158 = vld [vmem:[#allocation8 + $0x148] sm:$0xff]
    %v159 = vld [vmem:[#allocation8 + $0x150] sm:$0xff]
    %v160 = vld [vmem:[#allocation8 + $0x158] sm:$0xff]
    %v161 = vld [vmem:[#allocation8 + $0x160] sm:$0xff]
    %v162 = vld [vmem:[#allocation8 + $0x168] sm:$0xff]
    %v163 = vld [vmem:[#allocation8 + $0x170] sm:$0xff]
    %v164 = vld [vmem:[#allocation8 + $0x178] sm:$0xff]
    %v165 = vld [vmem:[#allocation8 + $0x180] sm:$0xff]
    %v166 = vld [vmem:[#allocation8 + $0x188] sm:$0xff]
    %v167 = vld [vmem:[#allocation8 + $0x190] sm:$0xff]
    %v168 = vld [vmem:[#allocation8 + $0x198] sm:$0xff]
    %v169 = vld [vmem:[#allocation8 + $0x1a0] sm:$0xff]
    %v170 = vld [vmem:[#allocation8 + $0x1a8] sm:$0xff]
    %v171 = vld [vmem:[#allocation8 + $0x1b0] sm:$0xff]
    %v172 = vld [vmem:[#allocation8 + $0x1b8] sm:$0xff]
    %v173 = vld [vmem:[#allocation8 + $0x1c0] sm:$0xff]
    %v174 = vld [vmem:[#allocation8 + $0x1c8] sm:$0xff]
    %v175 = vld [vmem:[#allocation8 + $0x1d0] sm:$0xff]
    %v176 = vld [vmem:[#allocation8 + $0x1d8] sm:$0xff]
    %v177 = vld [vmem:[#allocation8 + $0x1e0] sm:$0xff]
    %v178 = vld [vmem:[#allocation8 + $0x1e8] sm:$0xff]
    %v179 = vld [vmem:[#allocation8 + $0x1f0] sm:$0xff]
    %v180 = vld [vmem:[#allocation8 + $0x1f8] sm:$0xff]
    %v181 = vld [vmem:[#allocation10] sm:$0xff]
    %v182 = vld [vmem:[#allocation10 + $0x8] sm:$0xff]
    %v183 = vld [vmem:[#allocation10 + $0x10] sm:$0xff]
    %v184 = vld [vmem:[#allocation10 + $0x18] sm:$0xff]
    %v185 = vld [vmem:[#allocation10 + $0x20] sm:$0xff]
    %v186 = vld [vmem:[#allocation10 + $0x28] sm:$0xff]
    %v187 = vld [vmem:[#allocation10 + $0x30] sm:$0xff]
    %v188 = vld [vmem:[#allocation10 + $0x38] sm:$0xff]
    %v189 = vld [vmem:[#allocation10 + $0x40] sm:$0xff]
    %v190 = vld [vmem:[#allocation10 + $0x48] sm:$0xff]
    %v191 = vld [vmem:[#allocation10 + $0x50] sm:$0xff]
    %v192 = vld [vmem:[#allocation10 + $0x58] sm:$0xff]
    %v193 = vld [vmem:[#allocation10 + $0x60] sm:$0xff]
    %v194 = vld [vmem:[#allocation10 + $0x68] sm:$0xff]
    %v195 = vld [vmem:[#allocation10 + $0x70] sm:$0xff]
    %v196 = vld [vmem:[#allocation10 + $0x78] sm:$0xff]
    %v197 = vld [vmem:[#allocation10 + $0x80] sm:$0xff]
    %v198 = vld [vmem:[#allocation10 + $0x88] sm:$0xff]
    %v199 = vld [vmem:[#allocation10 + $0x90] sm:$0xff]
    %v200 = vld [vmem:[#allocation10 + $0x98] sm:$0xff]
    %v201 = vld [vmem:[#allocation10 + $0xa0] sm:$0xff]
    %v202 = vld [vmem:[#allocation10 + $0xa8] sm:$0xff]
    %v203 = vld [vmem:[#allocation10 + $0xb0] sm:$0xff]
    %v204 = vld [vmem:[#allocation10 + $0xb8] sm:$0xff]
    %v205 = vld [vmem:[#allocation10 + $0xc0] sm:$0xff]
    %v206 = vld [vmem:[#allocation10 + $0xc8] sm:$0xff]
    %v207 = vld [vmem:[#allocation10 + $0xd0] sm:$0xff]
    %v208 = vld [vmem:[#allocation10 + $0xd8] sm:$0xff]
    %v209 = vld [vmem:[#allocation10 + $0xe0] sm:$0xff]
    %v210 = vld [vmem:[#allocation10 + $0xe8] sm:$0xff]
    %v211 = vld [vmem:[#allocation10 + $0xf0] sm:$0xff]
    %v212 = vld [vmem:[#allocation10 + $0xf8] sm:$0xff]
    %v213 = vld [vmem:[#allocation10 + $0x100] sm:$0xff]
    %v214 = vld [vmem:[#allocation10 + $0x108] sm:$0xff]
    %v215 = vld [vmem:[#allocation10 + $0x110] sm:$0xff]
    %v216 = vld [vmem:[#allocation10 + $0x118] sm:$0xff]
    %v217 = vld [vmem:[#allocation10 + $0x120] sm:$0xff]
    %v218 = vld [vmem:[#allocation10 + $0x128] sm:$0xff]
    %v219 = vld [vmem:[#allocation10 + $0x130] sm:$0xff]
    %v220 = vld [vmem:[#allocation10 + $0x138] sm:$0xff]
    %v221 = vld [vmem:[#allocation10 + $0x140] sm:$0xff]
    %v222 = vld [vmem:[#allocation10 + $0x148] sm:$0xff]
    %v223 = vld [vmem:[#allocation10 + $0x150] sm:$0xff]
    %v224 = vld [vmem:[#allocation10 + $0x158] sm:$0xff]
    %v225 = vld [vmem:[#allocation10 + $0x160] sm:$0xff]
    %v226 = vld [vmem:[#allocation10 + $0x168] sm:$0xff]
    %v227 = vld [vmem:[#allocation10 + $0x170] sm:$0xff]
    %v228 = vld [vmem:[#allocation10 + $0x178] sm:$0xff]
    %v229 = vld [vmem:[#allocation10 + $0x180] sm:$0xff]
    %v230 = vld [vmem:[#allocation10 + $0x188] sm:$0xff]
    %v231 = vld [vmem:[#allocation10 + $0x190] sm:$0xff]
    %v232 = vld [vmem:[#allocation10 + $0x198] sm:$0xff]
    %v233 = vld [vmem:[#allocation10 + $0x1a0] sm:$0xff]
    %v234 = vld [vmem:[#allocation10 + $0x1a8] sm:$0xff]
    %v235 = vld [vmem:[#allocation10 + $0x1b0] sm:$0xff]
    %v236 = vld [vmem:[#allocation10 + $0x1b8] sm:$0xff]
    %v237 = vld [vmem:[#allocation10 + $0x1c0] sm:$0xff]
    %v238 = vld [vmem:[#allocation10 + $0x1c8] sm:$0xff]
    %v239 = vld [vmem:[#allocation10 + $0x1d0] sm:$0xff]
    %v240 = vld [vmem:[#allocation10 + $0x1d8] sm:$0xff]
    %v241 = vld [vmem:[#allocation10 + $0x1e0] sm:$0xff]
    %v242 = vld [vmem:[#allocation10 + $0x1e8] sm:$0xff]
    %v243 = vld [vmem:[#allocation10 + $0x1f0] sm:$0xff]
    %v244 = vld [vmem:[#allocation10 + $0x1f8] sm:$0xff]
    %245 = vmatprep.subr.mxu0 %v242
    %246 = vmatpush1.msra.mxu0 %v241
    %247 = vmatprep.subr.mxu0 %v238
    %248 = vmatpush1.msra.mxu0 %v237
    %249 = vmatprep.subr.mxu0 %v234
    %250 = vmatpush1.msra.mxu0 %v233
    %251 = vmatprep.subr.mxu0 %v230
    %252 = vmatpush1.msra.mxu0 %v229
    %253 = vmatprep.subr.mxu0 %v226
    %254 = vmatpush1.msra.mxu0 %v225
    %255 = vmatprep.subr.mxu0 %v222
    %256 = vmatpush1.msra.mxu0 %v221
    %257 = vmatprep.subr.mxu0 %v218
    %258 = vmatpush1.msra.mxu0 %v217
    %259 = vmatprep.subr.mxu0 %v214
    %260 = vmatpush1.msra.mxu0 %v213
    %261 = vmatprep.subr.mxu0 %v210
    %262 = vmatpush1.msra.mxu0 %v209
    %263 = vmatprep.subr.mxu0 %v206
    %264 = vmatpush1.msra.mxu0 %v205
    %265 = vmatprep.subr.mxu0 %v202
    %266 = vmatpush1.msra.mxu0 %v201
    %267 = vmatprep.subr.mxu0 %v198
    %268 = vmatpush1.msra.mxu0 %v197
    %269 = vmatprep.subr.mxu0 %v194
    %270 = vmatpush1.msra.mxu0 %v193
    %271 = vmatprep.subr.mxu0 %v190
    %272 = vmatpush1.msra.mxu0 %v189
    %273 = vmatprep.subr.mxu0 %v186
    %274 = vmatpush1.msra.mxu0 %v185
    %275 = vmatprep.subr.mxu0 %v182
    %276 = vmatpush1.msra.mxu0 %v181
    %277 = vmatprep.subr.mxu0 0.0
    %278 = vmatpush2.msra.mxu0 0.0
    %279 = vmatprep.subr.mxu0 0.0
    %280 = vmatpush2.msra.mxu0 0.0
    %281 = vmatprep.subr.mxu0 0.0
    %282 = vmatpush2.msra.mxu0 0.0
    %283 = vmatprep.subr.mxu0 0.0
    %284 = vmatpush2.msra.mxu0 0.0
    %285 = vmatprep.subr.mxu0 0.0
    %286 = vmatpush2.msra.mxu0 0.0
    %287 = vmatprep.subr.mxu0 0.0
    %288 = vmatpush2.msra.mxu0 0.0
    %289 = vmatprep.subr.mxu0 0.0
    %290 = vmatpush2.msra.mxu0 0.0
    %291 = vmatprep.subr.mxu0 0.0
    %292 = vmatpush2.msra.mxu0 0.0
    %293 = vmatprep.subr.mxu0 0.0
    %294 = vmatpush2.msra.mxu0 0.0
    %295 = vmatprep.subr.mxu0 0.0
    %296 = vmatpush2.msra.mxu0 0.0
    %297 = vmatprep.subr.mxu0 0.0
    %298 = vmatpush2.msra.mxu0 0.0
    %299 = vmatprep.subr.mxu0 0.0
    %300 = vmatpush2.msra.mxu0 0.0
    %301 = vmatprep.subr.mxu0 0.0
    %302 = vmatpush2.msra.mxu0 0.0
    %303 = vmatprep.subr.mxu0 0.0
    %304 = vmatpush2.msra.mxu0 0.0
    %305 = vmatprep.subr.mxu0 0.0
    %306 = vmatpush2.msra.mxu0 0.0
    %307 = vmatprep.subr.mxu0 0.0
    %308 = vmatpush2.msra.mxu0 0.0
    %309 = vmatprep.mubr.f32.mxu0 0.0
    %310 = vmatmul.mubr.f32.gmra.mxu0 %v115
    %v311 = vpop.f32.mrf.mxu0
    %v312 = vadd.f32 0.0, %v311
    %v313 = vpop.f32.mrf.mxu0
    %v314 = vadd.f32 0.0, %v313
    %315 = vdwg.mxu0
    %316 = vmatprep.subr.mxu0 %v244
    %317 = vmatpush1.msra.mxu0 %v243
    %318 = vmatprep.subr.mxu0 %v240
    %319 = vmatpush1.msra.mxu0 %v239
    %320 = vmatprep.subr.mxu0 %v236
    %321 = vmatpush1.msra.mxu0 %v235
    %322 = vmatprep.subr.mxu0 %v232
    %323 = vmatpush1.msra.mxu0 %v231
    %324 = vmatprep.subr.mxu0 %v228
    %325 = vmatpush1.msra.mxu0 %v227
    %326 = vmatprep.subr.mxu0 %v224
    %327 = vmatpush1.msra.mxu0 %v223
    %328 = vmatprep.subr.mxu0 %v220
    %329 = vmatpush1.msra.mxu0 %v219
    %330 = vmatprep.subr.mxu0 %v216
    %331 = vmatpush1.msra.mxu0 %v215
    %332 = vmatprep.subr.mxu0 %v212
    %333 = vmatpush1.msra.mxu0 %v211
    %334 = vmatprep.subr.mxu0 %v208
    %335 = vmatpush1.msra.mxu0 %v207
    %336 = vmatprep.subr.mxu0 %v204
    %337 = vmatpush1.msra.mxu0 %v203
    %338 = vmatprep.subr.mxu0 %v200
    %339 = vmatpush1.msra.mxu0 %v199
    %340 = vmatprep.subr.mxu0 %v196
    %341 = vmatpush1.msra.mxu0 %v195
    %342 = vmatprep.subr.mxu0 %v192
    %343 = vmatpush1.msra.mxu0 %v191
    %344 = vmatprep.subr.mxu0 %v188
    %345 = vmatpush1.msra.mxu0 %v187
    %346 = vmatprep.subr.mxu0 %v184
    %347 = vmatpush1.msra.mxu0 %v183
    %348 = vmatprep.subr.mxu0 0.0
    %349 = vmatpush2.msra.mxu0 0.0
    %350 = vmatprep.subr.mxu0 0.0
    %351 = vmatpush2.msra.mxu0 0.0
    %352 = vmatprep.subr.mxu0 0.0
    %353 = vmatpush2.msra.mxu0 0.0
    %354 = vmatprep.subr.mxu0 0.0
    %355 = vmatpush2.msra.mxu0 0.0
    %356 = vmatprep.subr.mxu0 0.0
    %357 = vmatpush2.msra.mxu0 0.0
    %358 = vmatprep.subr.mxu0 0.0
    %359 = vmatpush2.msra.mxu0 0.0
    %360 = vmatprep.subr.mxu0 0.0
    %361 = vmatpush2.msra.mxu0 0.0
    %362 = vmatprep.subr.mxu0 0.0
    %363 = vmatpush2.msra.mxu0 0.0
    %364 = vmatprep.subr.mxu0 0.0
    %365 = vmatpush2.msra.mxu0 0.0
    %366 = vmatprep.subr.mxu0 0.0
    %367 = vmatpush2.msra.mxu0 0.0
    %368 = vmatprep.subr.mxu0 0.0
    %369 = vmatpush2.msra.mxu0 0.0
    %370 = vmatprep.subr.mxu0 0.0
    %371 = vmatpush2.msra.mxu0 0.0
    %372 = vmatprep.subr.mxu0 0.0
    %373 = vmatpush2.msra.mxu0 0.0
    %374 = vmatprep.subr.mxu0 0.0
    %375 = vmatpush2.msra.mxu0 0.0
    %376 = vmatprep.subr.mxu0 0.0
    %377 = vmatpush2.msra.mxu0 0.0
    %378 = vmatprep.subr.mxu0 0.0
    %379 = vmatpush2.msra.mxu0 0.0
    %380 = vmatprep.mubr.f32.mxu0 0.0
    %381 = vmatmul.mubr.f32.gmra.mxu0 %v115
    %v382 = vpop.f32.mrf.mxu0
    %v383 = vadd.f32 0.0, %v382
    %v384 = vpop.f32.mrf.mxu0
    %v385 = vadd.f32 0.0, %v384
    %386 = vdwg.mxu0
    %387 = vmatprep.subr.mxu0 %v178
    %388 = vmatpush1.msra.mxu0 %v177
    %389 = vmatprep.subr.mxu0 %v174
    %390 = vmatpush1.msra.mxu0 %v173
    %391 = vmatprep.subr.mxu0 %v170
    %392 = vmatpush1.msra.mxu0 %v169
    %393 = vmatprep.subr.mxu0 %v166
    %394 = vmatpush1.msra.mxu0 %v165
    %395 = vmatprep.subr.mxu0 %v162
    %396 = vmatpush1.msra.mxu0 %v161
    %397 = vmatprep.subr.mxu0 %v158
    %398 = vmatpush1.msra.mxu0 %v157
    %399 = vmatprep.subr.mxu0 %v154
    %400 = vmatpush1.msra.mxu0 %v153
    %401 = vmatprep.subr.mxu0 %v150
    %402 = vmatpush1.msra.mxu0 %v149
    %403 = vmatprep.subr.mxu0 %v146
    %404 = vmatpush1.msra.mxu0 %v145
    %405 = vmatprep.subr.mxu0 %v142
    %406 = vmatpush1.msra.mxu0 %v141
    %407 = vmatprep.subr.mxu0 %v138
    %408 = vmatpush1.msra.mxu0 %v137
    %409 = vmatprep.subr.mxu0 %v134
    %410 = vmatpush1.msra.mxu0 %v133
    %411 = vmatprep.subr.mxu0 %v130
    %412 = vmatpush1.msra.mxu0 %v129
    %413 = vmatprep.subr.mxu0 %v126
    %414 = vmatpush1.msra.mxu0 %v125
    %415 = vmatprep.subr.mxu0 %v122
    %416 = vmatpush1.msra.mxu0 %v121
    %417 = vmatprep.subr.mxu0 %v118
    %418 = vmatpush1.msra.mxu0 %v117
    %419 = vmatprep.subr.mxu0 0.0
    %420 = vmatpush2.msra.mxu0 0.0
    %421 = vmatprep.subr.mxu0 0.0
    %422 = vmatpush2.msra.mxu0 0.0
    %423 = vmatprep.subr.mxu0 0.0
    %424 = vmatpush2.msra.mxu0 0.0
    %425 = vmatprep.subr.mxu0 0.0
    %426 = vmatpush2.msra.mxu0 0.0
    %427 = vmatprep.subr.mxu0 0.0
    %428 = vmatpush2.msra.mxu0 0.0
    %429 = vmatprep.subr.mxu0 0.0
    %430 = vmatpush2.msra.mxu0 0.0
    %431 = vmatprep.subr.mxu0 0.0
    %432 = vmatpush2.msra.mxu0 0.0
    %433 = vmatprep.subr.mxu0 0.0
    %434 = vmatpush2.msra.mxu0 0.0
    %435 = vmatprep.subr.mxu0 0.0
    %436 = vmatpush2.msra.mxu0 0.0
    %437 = vmatprep.subr.mxu0 0.0
    %438 = vmatpush2.msra.mxu0 0.0
    %439 = vmatprep.subr.mxu0 0.0
    %440 = vmatpush2.msra.mxu0 0.0
    %441 = vmatprep.subr.mxu0 0.0
    %442 = vmatpush2.msra.mxu0 0.0
    %443 = vmatprep.subr.mxu0 0.0
    %444 = vmatpush2.msra.mxu0 0.0
    %445 = vmatprep.subr.mxu0 0.0
    %446 = vmatpush2.msra.mxu0 0.0
    %447 = vmatprep.subr.mxu0 0.0
    %448 = vmatpush2.msra.mxu0 0.0
    %449 = vmatprep.subr.mxu0 0.0
    %450 = vmatpush2.msra.mxu0 0.0
    %451 = vmatprep.mubr.f32.mxu0 0.0
    %452 = vmatmul.mubr.f32.gmra.mxu0 %v114
    %v453 = vpop.f32.mrf.mxu0
    %v454 = vadd.f32 %v312, %v453
    %v455 = vpop.f32.mrf.mxu0
    %v456 = vadd.f32 %v314, %v455
    %457 = vdwg.mxu0
    %458 = vmatprep.subr.mxu0 %v180
    %459 = vmatpush1.msra.mxu0 %v179
    %460 = vmatprep.subr.mxu0 %v176
    %461 = vmatpush1.msra.mxu0 %v175
    %462 = vmatprep.subr.mxu0 %v172
    %463 = vmatpush1.msra.mxu0 %v171
    %464 = vmatprep.subr.mxu0 %v168
    %465 = vmatpush1.msra.mxu0 %v167
    %466 = vmatprep.subr.mxu0 %v164
    %467 = vmatpush1.msra.mxu0 %v163
    %468 = vmatprep.subr.mxu0 %v160
    %469 = vmatpush1.msra.mxu0 %v159
    %470 = vmatprep.subr.mxu0 %v156
    %471 = vmatpush1.msra.mxu0 %v155
    %472 = vmatprep.subr.mxu0 %v152
    %473 = vmatpush1.msra.mxu0 %v151
    %474 = vmatprep.subr.mxu0 %v148
    %475 = vmatpush1.msra.mxu0 %v147
    %476 = vmatprep.subr.mxu0 %v144
    %477 = vmatpush1.msra.mxu0 %v143
    %478 = vmatprep.subr.mxu0 %v140
    %479 = vmatpush1.msra.mxu0 %v139
    %480 = vmatprep.subr.mxu0 %v136
    %481 = vmatpush1.msra.mxu0 %v135
    %482 = vmatprep.subr.mxu0 %v132
    %483 = vmatpush1.msra.mxu0 %v131
    %484 = vmatprep.subr.mxu0 %v128
    %485 = vmatpush1.msra.mxu0 %v127
    %486 = vmatprep.subr.mxu0 %v124
    %487 = vmatpush1.msra.mxu0 %v123
    %488 = vmatprep.subr.mxu0 %v120
    %489 = vmatpush1.msra.mxu0 %v119
    %490 = vmatprep.subr.mxu0 0.0
    %491 = vmatpush2.msra.mxu0 0.0
    %492 = vmatprep.subr.mxu0 0.0
    %493 = vmatpush2.msra.mxu0 0.0
    %494 = vmatprep.subr.mxu0 0.0
    %495 = vmatpush2.msra.mxu0 0.0
    %496 = vmatprep.subr.mxu0 0.0
    %497 = vmatpush2.msra.mxu0 0.0
    %498 = vmatprep.subr.mxu0 0.0
    %499 = vmatpush2.msra.mxu0 0.0
    %500 = vmatprep.subr.mxu0 0.0
    %501 = vmatpush2.msra.mxu0 0.0
    %502 = vmatprep.subr.mxu0 0.0
    %503 = vmatpush2.msra.mxu0 0.0
    %504 = vmatprep.subr.mxu0 0.0
    %505 = vmatpush2.msra.mxu0 0.0
    %506 = vmatprep.subr.mxu0 0.0
    %507 = vmatpush2.msra.mxu0 0.0
    %508 = vmatprep.subr.mxu0 0.0
    %509 = vmatpush2.msra.mxu0 0.0
    %510 = vmatprep.subr.mxu0 0.0
    %511 = vmatpush2.msra.mxu0 0.0
    %512 = vmatprep.subr.mxu0 0.0
    %513 = vmatpush2.msra.mxu0 0.0
    %514 = vmatprep.subr.mxu0 0.0
    %515 = vmatpush2.msra.mxu0 0.0
    %516 = vmatprep.subr.mxu0 0.0
    %517 = vmatpush2.msra.mxu0 0.0
    %518 = vmatprep.subr.mxu0 0.0
    %519 = vmatpush2.msra.mxu0 0.0
    %520 = vmatprep.subr.mxu0 0.0
    %521 = vmatpush2.msra.mxu0 0.0
    %522 = vmatprep.mubr.f32.mxu0 0.0
    %523 = vmatmul.mubr.f32.gmra.mxu0 %v114
    %v524 = vpop.f32.mrf.mxu0
    %v525 = vadd.f32 %v383, %v524
    %v526 = vpop.f32.mrf.mxu0
    %v527 = vadd.f32 %v385, %v526
    %528 = vdwg.mxu0
    %v529 = vld [vmem:[%s5] sm:$0xf]
    %v531 = vlaneseq
    %v532 = vshrl.u32 %v531, 7
    %v533 = vsub.s32 0, %v532
    %v534 = vrot.slane %v529, %v533
    %v535 = vlaneseq
    %v536 = vshrl.u32 %v535, 7
    %v537 = vsub.s32 1, %v536
    %v538 = vrot.slane %v529, %v537
    %v539 = vlaneseq
    %v540 = vshrl.u32 %v539, 7
    %v541 = vsub.s32 2, %v540
    %v542 = vrot.slane %v529, %v541
    %v543 = vlaneseq
    %v544 = vshrl.u32 %v543, 7
    %v545 = vsub.s32 3, %v544
    %v546 = vrot.slane %v529, %v545
    %v551 = vadd.f32 %v454, %v534
    %v552 = vadd.f32 %v456, %v538
    %v553 = vadd.f32 %v525, %v542
    %v554 = vadd.f32 %v527, %v546
    %v555 = vxor.u32 %v551, 2147483648
    %v556 = vmul.f32 %v555, 1.442695
    %v557 = vpow.pop %v556
    %v558 = vadd.f32 %v557, 1.0
    %v559 = vrcp.pop %v558
    %v560 = vmul.f32 1.0, %v559
    %v561 = vxor.u32 %v552, 2147483648
    %v562 = vmul.f32 %v561, 1.442695
    %v563 = vpow.pop %v562
    %v564 = vadd.f32 %v563, 1.0
    %v565 = vrcp.pop %v564
    %v566 = vmul.f32 1.0, %v565
    %v567 = vtanh.pop %v553
    %v568 = vxor.u32 %v554, 2147483648
    %v569 = vmul.f32 %v568, 1.442695
    %v570 = vpow.pop %v569
    %v571 = vadd.f32 %v570, 1.0
    %v572 = vrcp.pop %v571
    %v573 = vmul.f32 1.0, %v572
    %v574 = vmul.f32 %v116, %v560
    %v575 = vmul.f32 %v566, %v567
    %v576 = vadd.f32 %v574, %v575
    %v577 = vtanh.pop %v576
    %v578 = vmul.f32 %v573, %v577
    %579 = vst [vmem:[#allocation14] sm:$0xff] %v576
    %580 = vst [vmem:[#allocation16] sm:$0xff] %v578
    %s581 = scalar_lea.vmem [#allocation7], 8
    %v582 = vld [vmem:[%s581] sm:$0xff]
    %s583 = scalar_lea.vmem [#allocation5], 8
    %v584 = vld [vmem:[%s583] sm:$0xff]
    %s585 = scalar_lea.vmem [#allocation8], 512
    %v586 = vld [vmem:[%s585] sm:$0xff]
    %v587 = vld [vmem:[%s585 + $0x8] sm:$0xff]
    %v588 = vld [vmem:[%s585 + $0x10] sm:$0xff]
    %v589 = vld [vmem:[%s585 + $0x18] sm:$0xff]
    %v590 = vld [vmem:[%s585 + $0x20] sm:$0xff]
    %v591 = vld [vmem:[%s585 + $0x28] sm:$0xff]
    %v592 = vld [vmem:[%s585 + $0x30] sm:$0xff]
    %v593 = vld [vmem:[%s585 + $0x38] sm:$0xff]
    %v594 = vld [vmem:[%s585 + $0x40] sm:$0xff]
    %v595 = vld [vmem:[%s585 + $0x48] sm:$0xff]
    %v596 = vld [vmem:[%s585 + $0x50] sm:$0xff]
    %v597 = vld [vmem:[%s585 + $0x58] sm:$0xff]
    %v598 = vld [vmem:[%s585 + $0x60] sm:$0xff]
    %v599 = vld [vmem:[%s585 + $0x68] sm:$0xff]
    %v600 = vld [vmem:[%s585 + $0x70] sm:$0xff]
    %v601 = vld [vmem:[%s585 + $0x78] sm:$0xff]
    %v602 = vld [vmem:[%s585 + $0x80] sm:$0xff]
    %v603 = vld [vmem:[%s585 + $0x88] sm:$0xff]
    %v604 = vld [vmem:[%s585 + $0x90] sm:$0xff]
    %v605 = vld [vmem:[%s585 + $0x98] sm:$0xff]
    %v606 = vld [vmem:[%s585 + $0xa0] sm:$0xff]
    %v607 = vld [vmem:[%s585 + $0xa8] sm:$0xff]
    %v608 = vld [vmem:[%s585 + $0xb0] sm:$0xff]
    %v609 = vld [vmem:[%s585 + $0xb8] sm:$0xff]
    %v610 = vld [vmem:[%s585 + $0xc0] sm:$0xff]
    %v611 = vld [vmem:[%s585 + $0xc8] sm:$0xff]
    %v612 = vld [vmem:[%s585 + $0xd0] sm:$0xff]
    %v613 = vld [vmem:[%s585 + $0xd8] sm:$0xff]
    %v614 = vld [vmem:[%s585 + $0xe0] sm:$0xff]
    %v615 = vld [vmem:[%s585 + $0xe8] sm:$0xff]
    %v616 = vld [vmem:[%s585 + $0xf0] sm:$0xff]
    %v617 = vld [vmem:[%s585 + $0xf8] sm:$0xff]
    %v618 = vld [vmem:[%s585 + $0x100] sm:$0xff]
    %v619 = vld [vmem:[%s585 + $0x108] sm:$0xff]
    %v620 = vld [vmem:[%s585 + $0x110] sm:$0xff]
    %v621 = vld [vmem:[%s585 + $0x118] sm:$0xff]
    %v622 = vld [vmem:[%s585 + $0x120] sm:$0xff]
    %v623 = vld [vmem:[%s585 + $0x128] sm:$0xff]
    %v624 = vld [vmem:[%s585 + $0x130] sm:$0xff]
    %v625 = vld [vmem:[%s585 + $0x138] sm:$0xff]
    %v626 = vld [vmem:[%s585 + $0x140] sm:$0xff]
    %v627 = vld [vmem:[%s585 + $0x148] sm:$0xff]
    %v628 = vld [vmem:[%s585 + $0x150] sm:$0xff]
    %v629 = vld [vmem:[%s585 + $0x158] sm:$0xff]
    %v630 = vld [vmem:[%s585 + $0x160] sm:$0xff]
    %v631 = vld [vmem:[%s585 + $0x168] sm:$0xff]
    %v632 = vld [vmem:[%s585 + $0x170] sm:$0xff]
    %v633 = vld [vmem:[%s585 + $0x178] sm:$0xff]
    %v634 = vld [vmem:[%s585 + $0x180] sm:$0xff]
    %v635 = vld [vmem:[%s585 + $0x188] sm:$0xff]
    %v636 = vld [vmem:[%s585 + $0x190] sm:$0xff]
    %v637 = vld [vmem:[%s585 + $0x198] sm:$0xff]
    %v638 = vld [vmem:[%s585 + $0x1a0] sm:$0xff]
    %v639 = vld [vmem:[%s585 + $0x1a8] sm:$0xff]
    %v640 = vld [vmem:[%s585 + $0x1b0] sm:$0xff]
    %v641 = vld [vmem:[%s585 + $0x1b8] sm:$0xff]
    %v642 = vld [vmem:[%s585 + $0x1c0] sm:$0xff]
    %v643 = vld [vmem:[%s585 + $0x1c8] sm:$0xff]
    %v644 = vld [vmem:[%s585 + $0x1d0] sm:$0xff]
    %v645 = vld [vmem:[%s585 + $0x1d8] sm:$0xff]
    %v646 = vld [vmem:[%s585 + $0x1e0] sm:$0xff]
    %v647 = vld [vmem:[%s585 + $0x1e8] sm:$0xff]
    %v648 = vld [vmem:[%s585 + $0x1f0] sm:$0xff]
    %v649 = vld [vmem:[%s585 + $0x1f8] sm:$0xff]
    %s650 = scalar_lea.vmem [#allocation10], 512
    %v651 = vld [vmem:[%s650] sm:$0xff]
    %v652 = vld [vmem:[%s650 + $0x8] sm:$0xff]
    %v653 = vld [vmem:[%s650 + $0x10] sm:$0xff]
    %v654 = vld [vmem:[%s650 + $0x18] sm:$0xff]
    %v655 = vld [vmem:[%s650 + $0x20] sm:$0xff]
    %v656 = vld [vmem:[%s650 + $0x28] sm:$0xff]
    %v657 = vld [vmem:[%s650 + $0x30] sm:$0xff]
    %v658 = vld [vmem:[%s650 + $0x38] sm:$0xff]
    %v659 = vld [vmem:[%s650 + $0x40] sm:$0xff]
    %v660 = vld [vmem:[%s650 + $0x48] sm:$0xff]
    %v661 = vld [vmem:[%s650 + $0x50] sm:$0xff]
    %v662 = vld [vmem:[%s650 + $0x58] sm:$0xff]
    %v663 = vld [vmem:[%s650 + $0x60] sm:$0xff]
    %v664 = vld [vmem:[%s650 + $0x68] sm:$0xff]
    %v665 = vld [vmem:[%s650 + $0x70] sm:$0xff]
    %v666 = vld [vmem:[%s650 + $0x78] sm:$0xff]
    %v667 = vld [vmem:[%s650 + $0x80] sm:$0xff]
    %v668 = vld [vmem:[%s650 + $0x88] sm:$0xff]
    %v669 = vld [vmem:[%s650 + $0x90] sm:$0xff]
    %v670 = vld [vmem:[%s650 + $0x98] sm:$0xff]
    %v671 = vld [vmem:[%s650 + $0xa0] sm:$0xff]
    %v672 = vld [vmem:[%s650 + $0xa8] sm:$0xff]
    %v673 = vld [vmem:[%s650 + $0xb0] sm:$0xff]
    %v674 = vld [vmem:[%s650 + $0xb8] sm:$0xff]
    %v675 = vld [vmem:[%s650 + $0xc0] sm:$0xff]
    %v676 = vld [vmem:[%s650 + $0xc8] sm:$0xff]
    %v677 = vld [vmem:[%s650 + $0xd0] sm:$0xff]
    %v678 = vld [vmem:[%s650 + $0xd8] sm:$0xff]
    %v679 = vld [vmem:[%s650 + $0xe0] sm:$0xff]
    %v680 = vld [vmem:[%s650 + $0xe8] sm:$0xff]
    %v681 = vld [vmem:[%s650 + $0xf0] sm:$0xff]
    %v682 = vld [vmem:[%s650 + $0xf8] sm:$0xff]
    %v683 = vld [vmem:[%s650 + $0x100] sm:$0xff]
    %v684 = vld [vmem:[%s650 + $0x108] sm:$0xff]
    %v685 = vld [vmem:[%s650 + $0x110] sm:$0xff]
    %v686 = vld [vmem:[%s650 + $0x118] sm:$0xff]
    %v687 = vld [vmem:[%s650 + $0x120] sm:$0xff]
    %v688 = vld [vmem:[%s650 + $0x128] sm:$0xff]
    %v689 = vld [vmem:[%s650 + $0x130] sm:$0xff]
    %v690 = vld [vmem:[%s650 + $0x138] sm:$0xff]
    %v691 = vld [vmem:[%s650 + $0x140] sm:$0xff]
    %v692 = vld [vmem:[%s650 + $0x148] sm:$0xff]
    %v693 = vld [vmem:[%s650 + $0x150] sm:$0xff]
    %v694 = vld [vmem:[%s650 + $0x158] sm:$0xff]
    %v695 = vld [vmem:[%s650 + $0x160] sm:$0xff]
    %v696 = vld [vmem:[%s650 + $0x168] sm:$0xff]
    %v697 = vld [vmem:[%s650 + $0x170] sm:$0xff]
    %v698 = vld [vmem:[%s650 + $0x178] sm:$0xff]
    %v699 = vld [vmem:[%s650 + $0x180] sm:$0xff]
    %v700 = vld [vmem:[%s650 + $0x188] sm:$0xff]
    %v701 = vld [vmem:[%s650 + $0x190] sm:$0xff]
    %v702 = vld [vmem:[%s650 + $0x198] sm:$0xff]
    %v703 = vld [vmem:[%s650 + $0x1a0] sm:$0xff]
    %v704 = vld [vmem:[%s650 + $0x1a8] sm:$0xff]
    %v705 = vld [vmem:[%s650 + $0x1b0] sm:$0xff]
    %v706 = vld [vmem:[%s650 + $0x1b8] sm:$0xff]
    %v707 = vld [vmem:[%s650 + $0x1c0] sm:$0xff]
    %v708 = vld [vmem:[%s650 + $0x1c8] sm:$0xff]
    %v709 = vld [vmem:[%s650 + $0x1d0] sm:$0xff]
    %v710 = vld [vmem:[%s650 + $0x1d8] sm:$0xff]
    %v711 = vld [vmem:[%s650 + $0x1e0] sm:$0xff]
    %v712 = vld [vmem:[%s650 + $0x1e8] sm:$0xff]
    %v713 = vld [vmem:[%s650 + $0x1f0] sm:$0xff]
    %v714 = vld [vmem:[%s650 + $0x1f8] sm:$0xff]
    %715 = vmatprep.subr.mxu0 %v712
    %716 = vmatpush1.msra.mxu0 %v711
    %717 = vmatprep.subr.mxu0 %v708
    %718 = vmatpush1.msra.mxu0 %v707
    %719 = vmatprep.subr.mxu0 %v704
    %720 = vmatpush1.msra.mxu0 %v703
    %721 = vmatprep.subr.mxu0 %v700
    %722 = vmatpush1.msra.mxu0 %v699
    %723 = vmatprep.subr.mxu0 %v696
    %724 = vmatpush1.msra.mxu0 %v695
    %725 = vmatprep.subr.mxu0 %v692
    %726 = vmatpush1.msra.mxu0 %v691
    %727 = vmatprep.subr.mxu0 %v688
    %728 = vmatpush1.msra.mxu0 %v687
    %729 = vmatprep.subr.mxu0 %v684
    %730 = vmatpush1.msra.mxu0 %v683
    %731 = vmatprep.subr.mxu0 %v680
    %732 = vmatpush1.msra.mxu0 %v679
    %733 = vmatprep.subr.mxu0 %v676
    %734 = vmatpush1.msra.mxu0 %v675
    %735 = vmatprep.subr.mxu0 %v672
    %736 = vmatpush1.msra.mxu0 %v671
    %737 = vmatprep.subr.mxu0 %v668
    %738 = vmatpush1.msra.mxu0 %v667
    %739 = vmatprep.subr.mxu0 %v664
    %740 = vmatpush1.msra.mxu0 %v663
    %741 = vmatprep.subr.mxu0 %v660
    %742 = vmatpush1.msra.mxu0 %v659
    %743 = vmatprep.subr.mxu0 %v656
    %744 = vmatpush1.msra.mxu0 %v655
    %745 = vmatprep.subr.mxu0 %v652
    %746 = vmatpush1.msra.mxu0 %v651
    %747 = vmatprep.subr.mxu0 0.0
    %748 = vmatpush2.msra.mxu0 0.0
    %749 = vmatprep.subr.mxu0 0.0
    %750 = vmatpush2.msra.mxu0 0.0
    %751 = vmatprep.subr.mxu0 0.0
    %752 = vmatpush2.msra.mxu0 0.0
    %753 = vmatprep.subr.mxu0 0.0
    %754 = vmatpush2.msra.mxu0 0.0
    %755 = vmatprep.subr.mxu0 0.0
    %756 = vmatpush2.msra.mxu0 0.0
    %757 = vmatprep.subr.mxu0 0.0
    %758 = vmatpush2.msra.mxu0 0.0
    %759 = vmatprep.subr.mxu0 0.0
    %760 = vmatpush2.msra.mxu0 0.0
    %761 = vmatprep.subr.mxu0 0.0
    %762 = vmatpush2.msra.mxu0 0.0
    %763 = vmatprep.subr.mxu0 0.0
    %764 = vmatpush2.msra.mxu0 0.0
    %765 = vmatprep.subr.mxu0 0.0
    %766 = vmatpush2.msra.mxu0 0.0
    %767 = vmatprep.subr.mxu0 0.0
    %768 = vmatpush2.msra.mxu0 0.0
    %769 = vmatprep.subr.mxu0 0.0
    %770 = vmatpush2.msra.mxu0 0.0
    %771 = vmatprep.subr.mxu0 0.0
    %772 = vmatpush2.msra.mxu0 0.0
    %773 = vmatprep.subr.mxu0 0.0
    %774 = vmatpush2.msra.mxu0 0.0
    %775 = vmatprep.subr.mxu0 0.0
    %776 = vmatpush2.msra.mxu0 0.0
    %777 = vmatprep.subr.mxu0 0.0
    %778 = vmatpush2.msra.mxu0 0.0
    %779 = vmatprep.mubr.f32.mxu0 0.0
    %780 = vmatmul.mubr.f32.gmra.mxu0 %v582
    %v781 = vpop.f32.mrf.mxu0
    %v782 = vadd.f32 0.0, %v781
    %v783 = vpop.f32.mrf.mxu0
    %v784 = vadd.f32 0.0, %v783
    %785 = vdwg.mxu0
    %786 = vmatprep.subr.mxu0 %v714
    %787 = vmatpush1.msra.mxu0 %v713
    %788 = vmatprep.subr.mxu0 %v710
    %789 = vmatpush1.msra.mxu0 %v709
    %790 = vmatprep.subr.mxu0 %v706
    %791 = vmatpush1.msra.mxu0 %v705
    %792 = vmatprep.subr.mxu0 %v702
    %793 = vmatpush1.msra.mxu0 %v701
    %794 = vmatprep.subr.mxu0 %v698
    %795 = vmatpush1.msra.mxu0 %v697
    %796 = vmatprep.subr.mxu0 %v694
    %797 = vmatpush1.msra.mxu0 %v693
    %798 = vmatprep.subr.mxu0 %v690
    %799 = vmatpush1.msra.mxu0 %v689
    %800 = vmatprep.subr.mxu0 %v686
    %801 = vmatpush1.msra.mxu0 %v685
    %802 = vmatprep.subr.mxu0 %v682
    %803 = vmatpush1.msra.mxu0 %v681
    %804 = vmatprep.subr.mxu0 %v678
    %805 = vmatpush1.msra.mxu0 %v677
    %806 = vmatprep.subr.mxu0 %v674
    %807 = vmatpush1.msra.mxu0 %v673
    %808 = vmatprep.subr.mxu0 %v670
    %809 = vmatpush1.msra.mxu0 %v669
    %810 = vmatprep.subr.mxu0 %v666
    %811 = vmatpush1.msra.mxu0 %v665
    %812 = vmatprep.subr.mxu0 %v662
    %813 = vmatpush1.msra.mxu0 %v661
    %814 = vmatprep.subr.mxu0 %v658
    %815 = vmatpush1.msra.mxu0 %v657
    %816 = vmatprep.subr.mxu0 %v654
    %817 = vmatpush1.msra.mxu0 %v653
    %818 = vmatprep.subr.mxu0 0.0
    %819 = vmatpush2.msra.mxu0 0.0
    %820 = vmatprep.subr.mxu0 0.0
    %821 = vmatpush2.msra.mxu0 0.0
    %822 = vmatprep.subr.mxu0 0.0
    %823 = vmatpush2.msra.mxu0 0.0
    %824 = vmatprep.subr.mxu0 0.0
    %825 = vmatpush2.msra.mxu0 0.0
    %826 = vmatprep.subr.mxu0 0.0
    %827 = vmatpush2.msra.mxu0 0.0
    %828 = vmatprep.subr.mxu0 0.0
    %829 = vmatpush2.msra.mxu0 0.0
    %830 = vmatprep.subr.mxu0 0.0
    %831 = vmatpush2.msra.mxu0 0.0
    %832 = vmatprep.subr.mxu0 0.0
    %833 = vmatpush2.msra.mxu0 0.0
    %834 = vmatprep.subr.mxu0 0.0
    %835 = vmatpush2.msra.mxu0 0.0
    %836 = vmatprep.subr.mxu0 0.0
    %837 = vmatpush2.msra.mxu0 0.0
    %838 = vmatprep.subr.mxu0 0.0
    %839 = vmatpush2.msra.mxu0 0.0
    %840 = vmatprep.subr.mxu0 0.0
    %841 = vmatpush2.msra.mxu0 0.0
    %842 = vmatprep.subr.mxu0 0.0
    %843 = vmatpush2.msra.mxu0 0.0
    %844 = vmatprep.subr.mxu0 0.0
    %845 = vmatpush2.msra.mxu0 0.0
    %846 = vmatprep.subr.mxu0 0.0
    %847 = vmatpush2.msra.mxu0 0.0
    %848 = vmatprep.subr.mxu0 0.0
    %849 = vmatpush2.msra.mxu0 0.0
    %850 = vmatprep.mubr.f32.mxu0 0.0
    %851 = vmatmul.mubr.f32.gmra.mxu0 %v582
    %v852 = vpop.f32.mrf.mxu0
    %v853 = vadd.f32 0.0, %v852
    %v854 = vpop.f32.mrf.mxu0
    %v855 = vadd.f32 0.0, %v854
    %856 = vdwg.mxu0
    %857 = vmatprep.subr.mxu0 %v647
    %858 = vmatpush1.msra.mxu0 %v646
    %859 = vmatprep.subr.mxu0 %v643
    %860 = vmatpush1.msra.mxu0 %v642
    %861 = vmatprep.subr.mxu0 %v639
    %862 = vmatpush1.msra.mxu0 %v638
    %863 = vmatprep.subr.mxu0 %v635
    %864 = vmatpush1.msra.mxu0 %v634
    %865 = vmatprep.subr.mxu0 %v631
    %866 = vmatpush1.msra.mxu0 %v630
    %867 = vmatprep.subr.mxu0 %v627
    %868 = vmatpush1.msra.mxu0 %v626
    %869 = vmatprep.subr.mxu0 %v623
    %870 = vmatpush1.msra.mxu0 %v622
    %871 = vmatprep.subr.mxu0 %v619
    %872 = vmatpush1.msra.mxu0 %v618
    %873 = vmatprep.subr.mxu0 %v615
    %874 = vmatpush1.msra.mxu0 %v614
    %875 = vmatprep.subr.mxu0 %v611
    %876 = vmatpush1.msra.mxu0 %v610
    %877 = vmatprep.subr.mxu0 %v607
    %878 = vmatpush1.msra.mxu0 %v606
    %879 = vmatprep.subr.mxu0 %v603
    %880 = vmatpush1.msra.mxu0 %v602
    %881 = vmatprep.subr.mxu0 %v599
    %882 = vmatpush1.msra.mxu0 %v598
    %883 = vmatprep.subr.mxu0 %v595
    %884 = vmatpush1.msra.mxu0 %v594
    %885 = vmatprep.subr.mxu0 %v591
    %886 = vmatpush1.msra.mxu0 %v590
    %887 = vmatprep.subr.mxu0 %v587
    %888 = vmatpush1.msra.mxu0 %v586
    %889 = vmatprep.subr.mxu0 0.0
    %890 = vmatpush2.msra.mxu0 0.0
    %891 = vmatprep.subr.mxu0 0.0
    %892 = vmatpush2.msra.mxu0 0.0
    %893 = vmatprep.subr.mxu0 0.0
    %894 = vmatpush2.msra.mxu0 0.0
    %895 = vmatprep.subr.mxu0 0.0
    %896 = vmatpush2.msra.mxu0 0.0
    %897 = vmatprep.subr.mxu0 0.0
    %898 = vmatpush2.msra.mxu0 0.0
    %899 = vmatprep.subr.mxu0 0.0
    %900 = vmatpush2.msra.mxu0 0.0
    %901 = vmatprep.subr.mxu0 0.0
    %902 = vmatpush2.msra.mxu0 0.0
    %903 = vmatprep.subr.mxu0 0.0
    %904 = vmatpush2.msra.mxu0 0.0
    %905 = vmatprep.subr.mxu0 0.0
    %906 = vmatpush2.msra.mxu0 0.0
    %907 = vmatprep.subr.mxu0 0.0
    %908 = vmatpush2.msra.mxu0 0.0
    %909 = vmatprep.subr.mxu0 0.0
    %910 = vmatpush2.msra.mxu0 0.0
    %911 = vmatprep.subr.mxu0 0.0
    %912 = vmatpush2.msra.mxu0 0.0
    %913 = vmatprep.subr.mxu0 0.0
    %914 = vmatpush2.msra.mxu0 0.0
    %915 = vmatprep.subr.mxu0 0.0
    %916 = vmatpush2.msra.mxu0 0.0
    %917 = vmatprep.subr.mxu0 0.0
    %918 = vmatpush2.msra.mxu0 0.0
    %919 = vmatprep.subr.mxu0 0.0
    %920 = vmatpush2.msra.mxu0 0.0
    %921 = vmatprep.mubr.f32.mxu0 0.0
    %922 = vmatmul.mubr.f32.gmra.mxu0 %v578
    %v923 = vpop.f32.mrf.mxu0
    %v924 = vadd.f32 %v782, %v923
    %v925 = vpop.f32.mrf.mxu0
    %v926 = vadd.f32 %v784, %v925
    %927 = vdwg.mxu0
    %928 = vmatprep.subr.mxu0 %v649
    %929 = vmatpush1.msra.mxu0 %v648
    %930 = vmatprep.subr.mxu0 %v645
    %931 = vmatpush1.msra.mxu0 %v644
    %932 = vmatprep.subr.mxu0 %v641
    %933 = vmatpush1.msra.mxu0 %v640
    %934 = vmatprep.subr.mxu0 %v637
    %935 = vmatpush1.msra.mxu0 %v636
    %936 = vmatprep.subr.mxu0 %v633
    %937 = vmatpush1.msra.mxu0 %v632
    %938 = vmatprep.subr.mxu0 %v629
    %939 = vmatpush1.msra.mxu0 %v628
    %940 = vmatprep.subr.mxu0 %v625
    %941 = vmatpush1.msra.mxu0 %v624
    %942 = vmatprep.subr.mxu0 %v621
    %943 = vmatpush1.msra.mxu0 %v620
    %944 = vmatprep.subr.mxu0 %v617
    %945 = vmatpush1.msra.mxu0 %v616
    %946 = vmatprep.subr.mxu0 %v613
    %947 = vmatpush1.msra.mxu0 %v612
    %948 = vmatprep.subr.mxu0 %v609
    %949 = vmatpush1.msra.mxu0 %v608
    %950 = vmatprep.subr.mxu0 %v605
    %951 = vmatpush1.msra.mxu0 %v604
    %952 = vmatprep.subr.mxu0 %v601
    %953 = vmatpush1.msra.mxu0 %v600
    %954 = vmatprep.subr.mxu0 %v597
    %955 = vmatpush1.msra.mxu0 %v596
    %956 = vmatprep.subr.mxu0 %v593
    %957 = vmatpush1.msra.mxu0 %v592
    %958 = vmatprep.subr.mxu0 %v589
    %959 = vmatpush1.msra.mxu0 %v588
    %960 = vmatprep.subr.mxu0 0.0
    %961 = vmatpush2.msra.mxu0 0.0
    %962 = vmatprep.subr.mxu0 0.0
    %963 = vmatpush2.msra.mxu0 0.0
    %964 = vmatprep.subr.mxu0 0.0
    %965 = vmatpush2.msra.mxu0 0.0
    %966 = vmatprep.subr.mxu0 0.0
    %967 = vmatpush2.msra.mxu0 0.0
    %968 = vmatprep.subr.mxu0 0.0
    %969 = vmatpush2.msra.mxu0 0.0
    %970 = vmatprep.subr.mxu0 0.0
    %971 = vmatpush2.msra.mxu0 0.0
    %972 = vmatprep.subr.mxu0 0.0
    %973 = vmatpush2.msra.mxu0 0.0
    %974 = vmatprep.subr.mxu0 0.0
    %975 = vmatpush2.msra.mxu0 0.0
    %976 = vmatprep.subr.mxu0 0.0
    %977 = vmatpush2.msra.mxu0 0.0
    %978 = vmatprep.subr.mxu0 0.0
    %979 = vmatpush2.msra.mxu0 0.0
    %980 = vmatprep.subr.mxu0 0.0
    %981 = vmatpush2.msra.mxu0 0.0
    %982 = vmatprep.subr.mxu0 0.0
    %983 = vmatpush2.msra.mxu0 0.0
    %984 = vmatprep.subr.mxu0 0.0
    %985 = vmatpush2.msra.mxu0 0.0
    %986 = vmatprep.subr.mxu0 0.0
    %987 = vmatpush2.msra.mxu0 0.0
    %988 = vmatprep.subr.mxu0 0.0
    %989 = vmatpush2.msra.mxu0 0.0
    %990 = vmatprep.subr.mxu0 0.0
    %991 = vmatpush2.msra.mxu0 0.0
    %992 = vmatprep.mubr.f32.mxu0 0.0
    %993 = vmatmul.mubr.f32.gmra.mxu0 %v578
    %v994 = vpop.f32.mrf.mxu0
    %v995 = vadd.f32 %v853, %v994
    %v996 = vpop.f32.mrf.mxu0
    %v997 = vadd.f32 %v855, %v996
    %998 = vdwg.mxu0
    %s999 = scalar_lea.vmem %s5, 4
    %v1000 = vld [vmem:[%s999] sm:$0xf]
    %v1002 = vlaneseq
    %v1003 = vshrl.u32 %v1002, 7
    %v1004 = vsub.s32 0, %v1003
    %v1005 = vrot.slane %v1000, %v1004
    %v1006 = vlaneseq
    %v1007 = vshrl.u32 %v1006, 7
    %v1008 = vsub.s32 1, %v1007
    %v1009 = vrot.slane %v1000, %v1008
    %v1010 = vlaneseq
    %v1011 = vshrl.u32 %v1010, 7
    %v1012 = vsub.s32 2, %v1011
    %v1013 = vrot.slane %v1000, %v1012
    %v1014 = vlaneseq
    %v1015 = vshrl.u32 %v1014, 7
    %v1016 = vsub.s32 3, %v1015
    %v1017 = vrot.slane %v1000, %v1016
    %v1022 = vadd.f32 %v924, %v1005
    %v1023 = vadd.f32 %v926, %v1009
    %v1024 = vadd.f32 %v995, %v1013
    %v1025 = vadd.f32 %v997, %v1017
    %v1026 = vxor.u32 %v1022, 2147483648
    %v1027 = vmul.f32 %v1026, 1.442695
    %v1028 = vpow.pop %v1027
    %v1029 = vadd.f32 %v1028, 1.0
    %v1030 = vrcp.pop %v1029
    %v1031 = vmul.f32 1.0, %v1030
    %v1032 = vxor.u32 %v1023, 2147483648
    %v1033 = vmul.f32 %v1032, 1.442695
    %v1034 = vpow.pop %v1033
    %v1035 = vadd.f32 %v1034, 1.0
    %v1036 = vrcp.pop %v1035
    %v1037 = vmul.f32 1.0, %v1036
    %v1038 = vtanh.pop %v1024
    %v1039 = vxor.u32 %v1025, 2147483648
    %v1040 = vmul.f32 %v1039, 1.442695
    %v1041 = vpow.pop %v1040
    %v1042 = vadd.f32 %v1041, 1.0
    %v1043 = vrcp.pop %v1042
    %v1044 = vmul.f32 1.0, %v1043
    %v1045 = vmul.f32 %v584, %v1031
    %v1046 = vmul.f32 %v1037, %v1038
    %v1047 = vadd.f32 %v1045, %v1046
    %v1048 = vtanh.pop %v1047
    %v1049 = vmul.f32 %v1044, %v1048
    %s1050 = scalar_lea.vmem [#allocation14], 8
    %1051 = vst [vmem:[%s1050] sm:$0xff] %v1047
    %s1052 = scalar_lea.vmem [#allocation16], 8
    %1053 = vst [vmem:[%s1052] sm:$0xff] %v1049
    %v1054 = vld [vmem:[#allocation11] sm:$0xff]
    %v1055 = vld [vmem:[#allocation11 + $0x8] sm:$0xff]
    %v1056 = vld [vmem:[#allocation11 + $0x10] sm:$0xff]
    %v1057 = vld [vmem:[#allocation11 + $0x18] sm:$0xff]
    %v1058 = vld [vmem:[#allocation11 + $0x20] sm:$0xff]
    %v1059 = vld [vmem:[#allocation11 + $0x28] sm:$0xff]
    %v1060 = vld [vmem:[#allocation11 + $0x30] sm:$0xff]
    %v1061 = vld [vmem:[#allocation11 + $0x38] sm:$0xff]
    %v1062 = vld [vmem:[#allocation11 + $0x40] sm:$0xff]
    %v1063 = vld [vmem:[#allocation11 + $0x48] sm:$0xff]
    %v1064 = vld [vmem:[#allocation11 + $0x50] sm:$0xff]
    %v1065 = vld [vmem:[#allocation11 + $0x58] sm:$0xff]
    %v1066 = vld [vmem:[#allocation11 + $0x60] sm:$0xff]
    %v1067 = vld [vmem:[#allocation11 + $0x68] sm:$0xff]
    %v1068 = vld [vmem:[#allocation11 + $0x70] sm:$0xff]
    %v1069 = vld [vmem:[#allocation11 + $0x78] sm:$0xff]
    %v1070 = vld [vmem:[%s7] sm:$0x1]
    %v1072 = vlaneseq
    %v1073 = vshrl.u32 %v1072, 7
    %v1074 = vsub.s32 0, %v1073
    %v1075 = vrot.slane %v1070, %v1074
    %1077 = vmatprep.subr.mxu0 0.0
    %1078 = vmatpush1.msra.mxu0 %v1069
    %1079 = vmatprep.subr.mxu0 0.0
    %1080 = vmatpush1.msra.mxu0 %v1068
    %1081 = vmatprep.subr.mxu0 0.0
    %1082 = vmatpush1.msra.mxu0 %v1067
    %1083 = vmatprep.subr.mxu0 0.0
    %1084 = vmatpush1.msra.mxu0 %v1066
    %1085 = vmatprep.subr.mxu0 0.0
    %1086 = vmatpush1.msra.mxu0 %v1065
    %1087 = vmatprep.subr.mxu0 0.0
    %1088 = vmatpush1.msra.mxu0 %v1064
    %1089 = vmatprep.subr.mxu0 0.0
    %1090 = vmatpush1.msra.mxu0 %v1063
    %1091 = vmatprep.subr.mxu0 0.0
    %1092 = vmatpush1.msra.mxu0 %v1062
    %1093 = vmatprep.subr.mxu0 0.0
    %1094 = vmatpush1.msra.mxu0 %v1061
    %1095 = vmatprep.subr.mxu0 0.0
    %1096 = vmatpush1.msra.mxu0 %v1060
    %1097 = vmatprep.subr.mxu0 0.0
    %1098 = vmatpush1.msra.mxu0 %v1059
    %1099 = vmatprep.subr.mxu0 0.0
    %1100 = vmatpush1.msra.mxu0 %v1058
    %1101 = vmatprep.subr.mxu0 0.0
    %1102 = vmatpush1.msra.mxu0 %v1057
    %1103 = vmatprep.subr.mxu0 0.0
    %1104 = vmatpush1.msra.mxu0 %v1056
    %1105 = vmatprep.subr.mxu0 0.0
    %1106 = vmatpush1.msra.mxu0 %v1055
    %1107 = vmatprep.subr.mxu0 0.0
    %1108 = vmatpush1.msra.mxu0 %v1054
    %1109 = vmatprep.subr.mxu0 0.0
    %1110 = vmatpush2.msra.mxu0 0.0
    %1111 = vmatprep.subr.mxu0 0.0
    %1112 = vmatpush2.msra.mxu0 0.0
    %1113 = vmatprep.subr.mxu0 0.0
    %1114 = vmatpush2.msra.mxu0 0.0
    %1115 = vmatprep.subr.mxu0 0.0
    %1116 = vmatpush2.msra.mxu0 0.0
    %1117 = vmatprep.subr.mxu0 0.0
    %1118 = vmatpush2.msra.mxu0 0.0
    %1119 = vmatprep.subr.mxu0 0.0
    %1120 = vmatpush2.msra.mxu0 0.0
    %1121 = vmatprep.subr.mxu0 0.0
    %1122 = vmatpush2.msra.mxu0 0.0
    %1123 = vmatprep.subr.mxu0 0.0
    %1124 = vmatpush2.msra.mxu0 0.0
    %1125 = vmatprep.subr.mxu0 0.0
    %1126 = vmatpush2.msra.mxu0 0.0
    %1127 = vmatprep.subr.mxu0 0.0
    %1128 = vmatpush2.msra.mxu0 0.0
    %1129 = vmatprep.subr.mxu0 0.0
    %1130 = vmatpush2.msra.mxu0 0.0
    %1131 = vmatprep.subr.mxu0 0.0
    %1132 = vmatpush2.msra.mxu0 0.0
    %1133 = vmatprep.subr.mxu0 0.0
    %1134 = vmatpush2.msra.mxu0 0.0
    %1135 = vmatprep.subr.mxu0 0.0
    %1136 = vmatpush2.msra.mxu0 0.0
    %1137 = vmatprep.subr.mxu0 0.0
    %1138 = vmatpush2.msra.mxu0 0.0
    %1139 = vmatprep.subr.mxu0 0.0
    %1140 = vmatpush2.msra.mxu0 0.0
    %1141 = vmatprep.mubr.f32.mxu0 0.0
    %1142 = vmatmul.mubr.f32.gmra.mxu0 %v1049
    %v1143 = vpop.f32.mrf.mxu0
    %v1144 = vadd.f32 %v1075, %v1143
    %v1145 = vpop.f32.mrf.mxu0
    %1146 = vdwg.mxu0
    %v1147 = vlaneseq
    %v1148 = vand.u32 %v1147, 127
    %vm1149 = vcmp.lt.s32.totalorder %v1148, 8
    %v1150 = vsel %vm1149, %v1144, -1e+30
    %1151 = vmax.xlane.f32.xlu0 %v1150
    %v1152 = vpop.xlane.xlu0 %1151
    %v1153 = vsub.f32 %v1150, %v1152
    %v1154 = vmul.f32 %v1153, 1.442695
    %v1155 = vpow.pop %v1154
    %1156 = vadd.xlane.f32.xlu0 %v1155
    %v1157 = vpop.xlane.xlu0 %1156
    %v1158 = vlog2.pop %v1157
    %v1159 = vmul.f32 %v1158, 0.6931472
    %v1160 = vsub.f32 %v1153, %v1159
    %1161 = vst [vmem:[#allocation13] sm:$0xff] %v1160
    // Predicated region
    $region58: #{tpu_custom_call.1} parent=1 // pred_check
      _
    $region59: #{tpu_custom_call.1} parent=1 // pred_check_branch
      %1163 = sbr.rel (0) target = $region61
    $region60: #{tpu_custom_call.1} parent=1 // pred_region
      %s1165 = ssub.s32 128, 128
      %1166 = vsyncadd [#allocation4], %s1165
      %s1168 = sshll.u32 [#allocation13], 4
      %s1169 = int_to_ptr.vmem [resolvable:$true] %s1168
      %1171 = dma.vmem_to_hbm [thread:$0]  %s1169, 128, %s8, [#allocation4]
    $region61: #{tpu_custom_call.1} parent=1 // pred_fallthru
      _
    // Predicated region
    $region62: #{tpu_custom_call.1} parent=1 // pred_check
      _
    $region63: #{tpu_custom_call.1} parent=1 // pred_check_branch
      %1173 = sbr.rel (0) target = $region65
    $region64: #{tpu_custom_call.1} parent=1 // pred_region
      %s1175 = ssub.s32 256, 256
      %1176 = vsyncadd [#allocation15], %s1175
      %s1177 = sshll.u32 [#allocation14], 4
      %s1178 = int_to_ptr.vmem [resolvable:$true] %s1177
      %1183 = dma.vmem_to_hbm [thread:$0]  %s1178, 256, %s9, [#allocation15], 128, 128, 8
    $region65: #{tpu_custom_call.1} parent=1 // pred_fallthru
      _
    // Predicated region
    $region66: #{tpu_custom_call.1} parent=1 // pred_check
      _
    $region67: #{tpu_custom_call.1} parent=1 // pred_check_branch
      %1185 = sbr.rel (0) target = $region69
    $region68: #{tpu_custom_call.1} parent=1 // pred_region
      %s1187 = ssub.s32 256, 256
      %1188 = vsyncadd [#allocation15], %s1187
      %s1189 = sshll.u32 [#allocation16], 4
      %s1190 = int_to_ptr.vmem [resolvable:$true] %s1189
      %1195 = dma.vmem_to_hbm [thread:$0]  %s1190, 256, %s10, [#allocation15], 128, 128, 8
    $region69: #{tpu_custom_call.1} parent=1 // pred_fallthru
      _
    // Predicated region
    $region70: #{tpu_custom_call.1} parent=1 // pred_check
      _
    $region71: #{tpu_custom_call.1} parent=1 // pred_check_branch
      %1197 = sbr.rel (0) target = $region73
    $region72: #{tpu_custom_call.1} parent=1 // pred_region
      %1198 = dma.done [#allocation4], 128
    $region73: #{tpu_custom_call.1} parent=1 // pred_fallthru
      _
    // Predicated region
    $region74: #{tpu_custom_call.1} parent=1 // pred_check
      _
    $region75: #{tpu_custom_call.1} parent=1 // pred_check_branch
      %1200 = sbr.rel (0) target = $region77
    $region76: #{tpu_custom_call.1} parent=1 // pred_region
      %1201 = dma.done [#allocation15], 256
    $region77: #{tpu_custom_call.1} parent=1 // pred_fallthru
      _
    // Predicated region
    $region78: #{tpu_custom_call.1} parent=1 // pred_check
      _
    $region79: #{tpu_custom_call.1} parent=1 // pred_check_branch
      %1203 = sbr.rel (0) target = $region81
    $region80: #{tpu_custom_call.1} parent=1 // pred_region
      %1204 = dma.done [#allocation15], 256
    $region81: #{tpu_custom_call.1} parent=1 // pred_fallthru
      _
    %1205 = vsyncpa [#allocation3], 1
    %1206 = vsyncpa [#allocation6], 1
    %1207 = vsyncpa [#allocation9], 1
    %1208 = vsyncpa [#allocation12], 1
    %1209 = vsyncpa [#allocation4], 1
    %1210 = vsyncpa [#allocation15], 1

</llo_original>
